<compile_context>
chip_gen: v5e
topology: v5e:2x2
jax: 0.10.0
libtpu: 0.0.40
codegen_flags: <defaults>
</compile_context>

<pallas_src>
import math
import functools

import jax
import jax.numpy as jnp
import numpy as np
from jax import lax
from jax.experimental import pallas as pl
from jax.experimental.pallas import tpu as pltpu

# ----------------------------- configuration --------------------------------
DIM = 32                   # model dim
NUM_HEADS = 4
HEAD_DIM = DIM // NUM_HEADS
FF_EXPANSION = 4
FF_INNER = DIM * FF_EXPANSION           # 128
CONV_EXPANSION = 2
CONV_INNER = DIM * CONV_EXPANSION       # 64
CONV_KERNEL = 7
CONV_PAD = CONV_KERNEL // 2
LN_EPS = 1e-5
BN_EPS = 1e-5

# Packed-vector layout: (name, n_rows, width).  All small per-channel vectors
# live in ONE (VEC_ROWS, VEC_WIDTH) array so the kernel has a single tiny-param
# input instead of ~25 separately padded/double-buffered VMEM tiles.
VEC_DEFS = (
    ("ln1_g", 1, DIM), ("ln1_b", 1, DIM),
    ("b_ff1_in", 1, 2 * FF_INNER), ("b_ff1_out", 1, DIM),
    ("lnA_g", 1, DIM), ("lnA_b", 1, DIM), ("b_ao", 1, DIM),
    ("lnC_g", 1, DIM), ("lnC_b", 1, DIM),
    ("b_pw1_out", 1, CONV_INNER), ("b_pw1_gate", 1, CONV_INNER),
    ("w_dw", CONV_KERNEL, CONV_INNER), ("b_dw", 1, CONV_INNER),
    ("bn_scale", 1, CONV_INNER), ("bn_shift", 1, CONV_INNER),
    ("b_pw2", 1, DIM),
    ("ln2_g", 1, DIM), ("ln2_b", 1, DIM),
    ("b_ff2_in", 1, 2 * FF_INNER), ("b_ff2_out", 1, DIM),
    ("lnF_g", 1, DIM), ("lnF_b", 1, DIM),
)
VEC_ROW = {}
_r = 0
for _name, _nr, _w in VEC_DEFS:
    VEC_ROW[_name] = _r
    _r += _nr
VEC_ROWS = _r
VEC_WIDTH = max(w for _, _, w in VEC_DEFS)

# Real weight matrices (kept as separate inputs, DMA'd once per kernel call).
MAT_NAMES = ("w_ff1_in", "w_ff1_out", "w_q", "w_k", "w_v", "w_ao",
             "w_pw1_out", "w_pw1_gate", "w_pw2", "w_ff2_in", "w_ff2_out")


# ------------------------------ Pallas kernel --------------------------------
def _conformer_kernel(mm_dtype, seq_len, *refs):
    x_ref, vec_ref = refs[0], refs[1]
    o_ref = refs[-1]
    mats = dict(zip(MAT_NAMES, refs[2:-1]))

    R, D = x_ref.shape            # R = block_batch * seq_len
    n = seq_len
    bblk = R // n

    def V(name, width, nrows=1):
        r = VEC_ROW[name]
        return vec_ref[r:r + nrows, :width]          # small f32 slice from pack

    def W(name):
        return mats[name][...]                        # already in mm_dtype

    def mm(a, b):
        return lax.dot_general(a.astype(mm_dtype), b,
                               (((a.ndim - 1,), (0,)), ((), ())),
                               preferred_element_type=jnp.float32)

    def ln(z, g, b):
        mu = jnp.mean(z, axis=-1, keepdims=True)
        var = jnp.mean(jnp.square(z - mu), axis=-1, keepdims=True)
        return (z - mu) * lax.rsqrt(var + LN_EPS) * g + b

    def ff(z, gname, bname, w_in, b_in, w_out, b_out):
        h = ln(z, V(gname, D), V(bname, D))
        h = mm(h, W(w_in)) + V(b_in, 2 * FF_INNER)
        # GLU split at lane 128 (vreg-aligned).
        h = h[:, :FF_INNER] * jax.nn.sigmoid(h[:, FF_INNER:])
        return mm(h, W(w_out)) + V(b_out, D)

    x = x_ref[...].astype(jnp.float32)

    # -------------------- feed-forward 1 (half residual) --------------------
    x = x + 0.5 * ff(x, "ln1_g", "ln1_b", "w_ff1_in", "b_ff1_in",
                     "w_ff1_out", "b_ff1_out")

    # ----------------------- multi-head self-attention ----------------------
    h = ln(x, V("lnA_g", D), V("lnA_b", D))
    q = mm(h, W("w_q"))
    k = mm(h, W("w_k"))
    v = mm(h, W("w_v"))
    q3 = q.reshape(bblk, n, D)
    k3 = k.reshape(bblk, n, D)
    v3 = v.reshape(bblk, n, D)

    def heads_to_batch(t3):
        # (bblk, n, D) -> (H*bblk, n, HEAD_DIM); batch index = head*bblk + b.
        return jnp.concatenate(
            [t3[:, :, hh * HEAD_DIM:(hh + 1) * HEAD_DIM]
             for hh in range(NUM_HEADS)], axis=0)

    q_h = heads_to_batch(q3)
    k_h = heads_to_batch(k3)
    v_h = heads_to_batch(v3)

    scale = HEAD_DIM ** (-0.5)
    s = jnp.einsum("bqd,bkd->bqk", q_h.astype(mm_dtype), k_h.astype(mm_dtype),
                   preferred_element_type=jnp.float32) * scale
    s = s - jnp.max(s, axis=-1, keepdims=True)
    p = jnp.exp(s)
    p = p * pl.reciprocal(jnp.sum(p, axis=-1, keepdims=True), approx=True)
    ctx = jnp.einsum("bqk,bkd->bqd", p.astype(mm_dtype), v_h.astype(mm_dtype),
                     preferred_element_type=jnp.float32)   # (H*bblk, n, Hd)

    # Project each head through its (sublane-aligned) row block of w_out and
    # accumulate -- no lane concat of 8-wide head chunks.
    w_ao = W("w_ao")
    attn = jnp.zeros((R, D), jnp.float32)
    for hh in range(NUM_HEADS):
        oh = ctx[hh * bblk:(hh + 1) * bblk].reshape(R, HEAD_DIM)
        attn = attn + mm(oh, w_ao[hh * HEAD_DIM:(hh + 1) * HEAD_DIM, :])
    x = x + attn + V("b_ao", D)

    # --------------------------- convolution module --------------------------
    h = ln(x, V("lnC_g", D), V("lnC_b", D))
    h_out = mm(h, W("w_pw1_out")) + V("b_pw1_out", CONV_INNER)
    h_gate = mm(h, W("w_pw1_gate")) + V("b_pw1_gate", CONV_INNER)
    hc = h_out * jax.nn.sigmoid(h_gate)                       # GLU -> (R, C)

    # Depthwise conv along time: zero-pad the time axis once, then accumulate
    # CONV_KERNEL shifted slices (XLU shifts + VPU FMA; no MXU matmuls).
    hc3 = hc.reshape(bblk, n, CONV_INNER)
    zpad = jnp.zeros((bblk, CONV_PAD, CONV_INNER), jnp.float32)
    hpad = jnp.concatenate([zpad, hc3, zpad], axis=1)          # (bblk, n+2P, C)
    w_dw = V("w_dw", CONV_INNER, CONV_KERNEL)                  # (K, C)
    y = jnp.zeros((bblk, n, CONV_INNER), jnp.float32)
    for kk in range(CONV_KERNEL):
        y = y + hpad[:, kk:kk + n, :] * w_dw[kk:kk + 1, :]
    y = y.reshape(R, CONV_INNER) + V("b_dw", CONV_INNER)
    # Eval-mode BatchNorm folded into scale/shift in the wrapper.
    y = y * V("bn_scale", CONV_INNER) + V("bn_shift", CONV_INNER)
    y = y * jax.nn.sigmoid(y)                                  # Swish
    x = x + mm(y, W("w_pw2")) + V("b_pw2", D)

    # ------------------- feed-forward 2 + final LayerNorm --------------------
    x = x + 0.5 * ff(x, "ln2_g", "ln2_b", "w_ff2_in", "b_ff2_in",
                     "w_ff2_out", "b_ff2_out")
    x = ln(x, V("lnF_g", D), V("lnF_b", D))
    o_ref[...] = x.astype(o_ref.dtype)


# --------------------------- parameter repacking ------------------------------
def pack_params(params, matmul_dtype=jnp.float32):
    p = params
    bn_scale = p["bn_g"] * lax.rsqrt(p["bn_var"] + BN_EPS)
    bn_shift = p["bn_b"] - p["bn_mean"] * bn_scale
    vec_src = {
        "ln1_g": p["ln1_g"], "ln1_b": p["ln1_b"],
        "b_ff1_in": p["b_ff1_in"], "b_ff1_out": p["b_ff1_out"],
        "lnA_g": p["lnA_g"], "lnA_b": p["lnA_b"], "b_ao": p["b_ao"],
        "lnC_g": p["lnC_g"], "lnC_b": p["lnC_b"],
        "b_pw1_out": p["b_pw1"][:, :CONV_INNER],
        "b_pw1_gate": p["b_pw1"][:, CONV_INNER:],
        "w_dw": p["w_dw"], "b_dw": p["b_dw"],
        "bn_scale": bn_scale, "bn_shift": bn_shift,
        "b_pw2": p["b_pw2"],
        "ln2_g": p["ln2_g"], "ln2_b": p["ln2_b"],
        "b_ff2_in": p["b_ff2_in"], "b_ff2_out": p["b_ff2_out"],
        "lnF_g": p["lnF_g"], "lnF_b": p["lnF_b"],
    }
    vec_pack = jnp.zeros((VEC_ROWS, VEC_WIDTH), jnp.float32)
    for name, nrows, width in VEC_DEFS:
        r = VEC_ROW[name]
        vec_pack = vec_pack.at[r:r + nrows, :width].set(
            jnp.asarray(vec_src[name], jnp.float32).reshape(nrows, width))

    mats = {
        "w_ff1_in": p["w_ff1_in"], "w_ff1_out": p["w_ff1_out"],
        "w_q": p["w_qkv"][:, :DIM],
        "w_k": p["w_qkv"][:, DIM:2 * DIM],
        "w_v": p["w_qkv"][:, 2 * DIM:],
        "w_ao": p["w_ao"],
        "w_pw1_out": p["w_pw1"][:, :CONV_INNER],
        "w_pw1_gate": p["w_pw1"][:, CONV_INNER:],
        "w_pw2": p["w_pw2"],
        "w_ff2_in": p["w_ff2_in"], "w_ff2_out": p["w_ff2_out"],
    }
    mat_list = [mats[name].astype(matmul_dtype) for name in MAT_NAMES]
    return vec_pack, mat_list


# --------------------------------- wrapper ------------------------------------
@functools.partial(jax.jit, static_argnames=("block_batch", "matmul_dtype"))
def conformer_block_pallas(x, params, *, block_batch=None,
                           matmul_dtype=jnp.float32):
    B, N, D = x.shape
    assert D == DIM
    if block_batch is None:
        # Keep >= 2 grid steps when possible so both v7x TensorCores get work;
        # each step still folds block_batch*N rows into every matmul.
        block_batch = B // 2 if (B >= 2 and B % 2 == 0) else B
    assert B % block_batch == 0
    grid_steps = B // block_batch
    rows_per_block = block_batch * N

    vec_pack, mat_list = pack_params(params, matmul_dtype)
    x2 = x.reshape(B * N, D).astype(jnp.float32)     # flattened (rows, D) slab

    in_specs = [pl.BlockSpec((rows_per_block, D), lambda g: (g, 0)),
                pl.BlockSpec(vec_pack.shape, lambda g: (0, 0))]
    for m in mat_list:
        in_specs.append(pl.BlockSpec(m.shape, lambda g: (0, 0)))

    kernel = functools.partial(_conformer_kernel, matmul_dtype, N)

    out2 = pl.pallas_call(
        kernel,
        out_shape=jax.ShapeDtypeStruct((B * N, D), jnp.float32),
        grid=(grid_steps,),
        in_specs=in_specs,
        out_specs=pl.BlockSpec((rows_per_block, D), lambda g: (g, 0)),
        compiler_params=pltpu.CompilerParams(
            dimension_semantics=("parallel",)),
    )(x2, vec_pack, *mat_list)
    return out2.reshape(B, N, D)


# ------------------------- pure-JAX reference path ----------------------------
def _mm(a, b):
    return lax.dot_general(a, b, (((a.ndim - 1,), (0,)), ((), ())),
                           preferred_element_type=jnp.float32)


def _mm_nt(a, b):
    return lax.dot_general(a, b, (((1,), (1,)), ((), ())),
                           preferred_element_type=jnp.float32)


def _layernorm(x, g, b):
    mu = jnp.mean(x, axis=-1, keepdims=True)
    var = jnp.mean((x - mu) ** 2, axis=-1, keepdims=True)
    return (x - mu) * lax.rsqrt(var + LN_EPS) * g + b


def _glu_last(x, inner):
    out, gate = x[:, :inner], x[:, inner:]
    return out * jax.nn.sigmoid(gate)


def _feed_forward(x, g, b, w_in, b_in, w_out, b_out):
    h = _layernorm(x, g, b)
    h = _mm(h, w_in) + b_in
    h = _glu_last(h, FF_INNER)
    return _mm(h, w_out) + b_out


def _attention(x, g, b, w_qkv, w_o, b_o):
    h = _layernorm(x, g, b)
    qkv = _mm(h, w_qkv)
    q, k, v = qkv[:, :DIM], qkv[:, DIM:2 * DIM], qkv[:, 2 * DIM:]
    scale = HEAD_DIM ** (-0.5)
    outs = []
    for hh in range(NUM_HEADS):
        sl = slice(hh * HEAD_DIM, (hh + 1) * HEAD_DIM)
        qh, kh, vh = q[:, sl], k[:, sl], v[:, sl]
        dots = _mm_nt(qh, kh) * scale
        dots = dots - jnp.max(dots, axis=-1, keepdims=True)
        pr = jnp.exp(dots)
        pr = pr / jnp.sum(pr, axis=-1, keepdims=True)
        outs.append(_mm(pr, vh))
    out = jnp.concatenate(outs, axis=-1)
    return _mm(out, w_o) + b_o


def _conv_module(x, g, b, w_pw1, b_pw1, w_dw, b_dw,
                 bn_g, bn_b, bn_mean, bn_var, w_pw2, b_pw2):
    n = x.shape[0]
    h = _layernorm(x, g, b)
    h = _mm(h, w_pw1) + b_pw1
    h = _glu_last(h, CONV_INNER)
    ti = lax.broadcasted_iota(jnp.int32, (n, n), 0)
    si = lax.broadcasted_iota(jnp.int32, (n, n), 1)
    y = jnp.zeros((n, CONV_INNER), jnp.float32)
    for kk in range(CONV_KERNEL):
        off = kk - CONV_PAD
        shift = (si == (ti + off)).astype(jnp.float32)
        y = y + _mm(shift, h) * w_dw[kk:kk + 1, :]
    y = y + b_dw
    y = (y - bn_mean) * lax.rsqrt(bn_var + BN_EPS) * bn_g + bn_b
    y = y * jax.nn.sigmoid(y)
    return _mm(y, w_pw2) + b_pw2


def block_forward(x, p):
    x = x + 0.5 * _feed_forward(x, p["ln1_g"], p["ln1_b"],
                                p["w_ff1_in"], p["b_ff1_in"],
                                p["w_ff1_out"], p["b_ff1_out"])
    x = x + _attention(x, p["lnA_g"], p["lnA_b"], p["w_qkv"], p["w_ao"], p["b_ao"])
    x = x + _conv_module(x, p["lnC_g"], p["lnC_b"], p["w_pw1"], p["b_pw1"],
                         p["w_dw"], p["b_dw"], p["bn_g"], p["bn_b"],
                         p["bn_mean"], p["bn_var"], p["w_pw2"], p["b_pw2"])
    x = x + 0.5 * _feed_forward(x, p["ln2_g"], p["ln2_b"],
                                p["w_ff2_in"], p["b_ff2_in"],
                                p["w_ff2_out"], p["b_ff2_out"])
    return _layernorm(x, p["lnF_g"], p["lnF_b"])


# --------------------------- parameter construction ---------------------------
def init_params(key):
    ks = iter(jax.random.split(key, 64))

    def n(shape, scale=0.05):
        return scale * jax.random.normal(next(ks), shape, dtype=jnp.float32)

    D, F, C, K = DIM, FF_INNER, CONV_INNER, CONV_KERNEL
    p = {}
    p["ln1_g"], p["ln1_b"] = 1.0 + n((1, D)), n((1, D))
    p["w_ff1_in"] = n((D, 2 * F), 1.0 / math.sqrt(D))
    p["b_ff1_in"] = n((1, 2 * F))
    p["w_ff1_out"] = n((F, D), 1.0 / math.sqrt(F))
    p["b_ff1_out"] = n((1, D))

    p["lnA_g"], p["lnA_b"] = 1.0 + n((1, D)), n((1, D))
    p["w_qkv"] = n((D, 3 * D), 1.0 / math.sqrt(D))
    p["w_ao"] = n((D, D), 1.0 / math.sqrt(D))
    p["b_ao"] = n((1, D))

    p["lnC_g"], p["lnC_b"] = 1.0 + n((1, D)), n((1, D))
    p["w_pw1"] = n((D, 2 * C), 1.0 / math.sqrt(D))
    p["b_pw1"] = n((1, 2 * C))
    p["w_dw"] = n((K, C), 1.0 / math.sqrt(K))
    p["b_dw"] = n((1, C))
    p["bn_g"], p["bn_b"] = 1.0 + n((1, C)), n((1, C))
    p["bn_mean"] = n((1, C))
    p["bn_var"] = jax.random.uniform(next(ks), (1, C), jnp.float32, 0.5, 1.5)
    p["w_pw2"] = n((C, D), 1.0 / math.sqrt(C))
    p["b_pw2"] = n((1, D))

    p["ln2_g"], p["ln2_b"] = 1.0 + n((1, D)), n((1, D))
    p["w_ff2_in"] = n((D, 2 * F), 1.0 / math.sqrt(D))
    p["b_ff2_in"] = n((1, 2 * F))
    p["w_ff2_out"] = n((F, D), 1.0 / math.sqrt(F))
    p["b_ff2_out"] = n((1, D))

    p["lnF_g"], p["lnF_b"] = 1.0 + n((1, D)), n((1, D))
    return p


# ------------------------------------ main ------------------------------------
if __name__ == "__main__":
    B, N = 2, 8
    key = jax.random.PRNGKey(0)
    kx, kp = jax.random.split(key)

    x = jax.random.normal(kx, (B, N, DIM), dtype=jnp.float32)
    params = init_params(kp)

    out = conformer_block_pallas(x, params)   # f32 matmuls (strict check)
    out = jax.block_until_ready(out)

    # Pure-JAX reference (unpacked params, exact softmax division).
    ref = jax.vmap(lambda xb: block_forward(xb, params))(x)
    # Tolerance covers the approx-reciprocal softmax normalization.
    np.testing.assert_allclose(np.asarray(out), np.asarray(ref),
                               rtol=5e-3, atol=5e-3)

    print("KERNEL_OK")
</pallas_src>

<mosaic_0001>
module attributes {stable_mosaic.version = 11 : i64} {
  func.func @_conformer_kernel(%arg0: i32, %arg1: memref<8x32xf32, #tpu.memory_space<vmem>>, %arg2: memref<28x256xf32, #tpu.memory_space<vmem>>, %arg3: memref<32x256xf32, #tpu.memory_space<vmem>>, %arg4: memref<128x32xf32, #tpu.memory_space<vmem>>, %arg5: memref<32x32xf32, #tpu.memory_space<vmem>>, %arg6: memref<32x32xf32, #tpu.memory_space<vmem>>, %arg7: memref<32x32xf32, #tpu.memory_space<vmem>>, %arg8: memref<32x32xf32, #tpu.memory_space<vmem>>, %arg9: memref<32x64xf32, #tpu.memory_space<vmem>>, %arg10: memref<32x64xf32, #tpu.memory_space<vmem>>, %arg11: memref<64x32xf32, #tpu.memory_space<vmem>>, %arg12: memref<32x256xf32, #tpu.memory_space<vmem>>, %arg13: memref<128x32xf32, #tpu.memory_space<vmem>>, %arg14: memref<8x32xf32, #tpu.memory_space<vmem>>) attributes {dimension_semantics = [#tpu.dimension_semantics<parallel>], iteration_bounds = array<i64: 2>, scalar_prefetch = 0 : i64, scratch_operands = 0 : i64, tpu.core_type = #tpu.core_type<tc>, window_params = [{transform_indices = @transform_0, window_bounds = array<i64: 8, 32>}, {pipeline_mode = #tpu.pipeline_mode<synchronous>, transform_indices = @transform_1, window_bounds = array<i64: 28, 256>}, {pipeline_mode = #tpu.pipeline_mode<synchronous>, transform_indices = @transform_2, window_bounds = array<i64: 32, 256>}, {pipeline_mode = #tpu.pipeline_mode<synchronous>, transform_indices = @transform_3, window_bounds = array<i64: 128, 32>}, {pipeline_mode = #tpu.pipeline_mode<synchronous>, transform_indices = @transform_4, window_bounds = array<i64: 32, 32>}, {pipeline_mode = #tpu.pipeline_mode<synchronous>, transform_indices = @transform_5, window_bounds = array<i64: 32, 32>}, {pipeline_mode = #tpu.pipeline_mode<synchronous>, transform_indices = @transform_6, window_bounds = array<i64: 32, 32>}, {pipeline_mode = #tpu.pipeline_mode<synchronous>, transform_indices = @transform_7, window_bounds = array<i64: 32, 32>}, {pipeline_mode = #tpu.pipeline_mode<synchronous>, transform_indices = @transform_8, window_bounds = array<i64: 32, 64>}, {pipeline_mode = #tpu.pipeline_mode<synchronous>, transform_indices = @transform_9, window_bounds = array<i64: 32, 64>}, {pipeline_mode = #tpu.pipeline_mode<synchronous>, transform_indices = @transform_10, window_bounds = array<i64: 64, 32>}, {pipeline_mode = #tpu.pipeline_mode<synchronous>, transform_indices = @transform_11, window_bounds = array<i64: 32, 256>}, {pipeline_mode = #tpu.pipeline_mode<synchronous>, transform_indices = @transform_12, window_bounds = array<i64: 128, 32>}, {transform_indices = @transform_13, window_bounds = array<i64: 8, 32>}]} {
    %c0 = arith.constant 0 : index
    %c0_0 = arith.constant 0 : index
    %0 = vector.load %arg1[%c0, %c0_0] : memref<8x32xf32, #tpu.memory_space<vmem>>, vector<8x32xf32>
    %c0_1 = arith.constant 0 : index
    %c0_2 = arith.constant 0 : index
    %1 = vector.load %arg2[%c0_1, %c0_2] : memref<28x256xf32, #tpu.memory_space<vmem>>, vector<1x32xf32>
    %c1 = arith.constant 1 : index
    %c0_3 = arith.constant 0 : index
    %2 = vector.load %arg2[%c1, %c0_3] : memref<28x256xf32, #tpu.memory_space<vmem>>, vector<1x32xf32>
    %cst = arith.constant dense<0.000000e+00> : vector<8xf32>
    %3 = vector.multi_reduction <add>, %0, %cst [1] : vector<8x32xf32> to vector<8xf32>
    %4 = vector.shape_cast %3 : vector<8xf32> to vector<8x1xf32>
    %cst_4 = arith.constant 3.200000e+01 : f32
    %5 = vector.broadcast %cst_4 : f32 to vector<8x1xf32>
    %6 = arith.divf %4, %5 : vector<8x1xf32>
    %7 = vector.broadcast %6 : vector<8x1xf32> to vector<8x32xf32>
    %8 = arith.subf %0, %7 : vector<8x32xf32>
    %9 = arith.mulf %8, %8 : vector<8x32xf32>
    %cst_5 = arith.constant dense<0.000000e+00> : vector<8xf32>
    %10 = vector.multi_reduction <add>, %9, %cst_5 [1] : vector<8x32xf32> to vector<8xf32>
    %11 = vector.shape_cast %10 : vector<8xf32> to vector<8x1xf32>
    %cst_6 = arith.constant 3.200000e+01 : f32
    %12 = vector.broadcast %cst_6 : f32 to vector<8x1xf32>
    %13 = arith.divf %11, %12 : vector<8x1xf32>
    %14 = vector.broadcast %6 : vector<8x1xf32> to vector<8x32xf32>
    %15 = arith.subf %0, %14 : vector<8x32xf32>
    %cst_7 = arith.constant 9.99999974E-6 : f32
    %16 = vector.broadcast %cst_7 : f32 to vector<8x1xf32>
    %17 = arith.addf %13, %16 : vector<8x1xf32>
    %18 = math.rsqrt %17 : vector<8x1xf32>
    %19 = vector.broadcast %18 : vector<8x1xf32> to vector<8x32xf32>
    %20 = arith.mulf %15, %19 : vector<8x32xf32>
    %21 = vector.broadcast %1 : vector<1x32xf32> to vector<8x32xf32>
    %22 = arith.mulf %20, %21 : vector<8x32xf32>
    %23 = vector.broadcast %2 : vector<1x32xf32> to vector<8x32xf32>
    %24 = arith.addf %22, %23 : vector<8x32xf32>
    %c0_8 = arith.constant 0 : index
    %c0_9 = arith.constant 0 : index
    %25 = vector.load %arg3[%c0_8, %c0_9] : memref<32x256xf32, #tpu.memory_space<vmem>>, vector<32x256xf32>
    %cst_10 = arith.constant dense<0.000000e+00> : vector<8x256xf32>
    %26 = tpu.matmul %24, %25, %cst_10 {dimension_numbers = #tpu.dot_dimension_numbers<[1], [0], [0], [1], [0, 0, 1, 1], [], []>} : vector<8x32xf32>, vector<32x256xf32>, vector<8x256xf32> -> vector<8x256xf32>
    %c2 = arith.constant 2 : index
    %c0_11 = arith.constant 0 : index
    %27 = vector.load %arg2[%c2, %c0_11] : memref<28x256xf32, #tpu.memory_space<vmem>>, vector<1x256xf32>
    %28 = vector.broadcast %27 : vector<1x256xf32> to vector<8x256xf32>
    %29 = arith.addf %26, %28 : vector<8x256xf32>
    %30 = vector.extract_strided_slice %29 {offsets = [0, 0], sizes = [8, 128], strides = [1, 1]} : vector<8x256xf32> to vector<8x128xf32>
    %31 = vector.extract_strided_slice %29 {offsets = [0, 128], sizes = [8, 128], strides = [1, 1]} : vector<8x256xf32> to vector<8x128xf32>
    %32 = arith.negf %31 : vector<8x128xf32>
    %33 = math.exp %32 : vector<8x128xf32>
    %cst_12 = arith.constant 1.000000e+00 : f32
    %34 = vector.broadcast %cst_12 : f32 to vector<8x128xf32>
    %35 = arith.addf %34, %33 : vector<8x128xf32>
    %36 = arith.divf %34, %35 : vector<8x128xf32>
    %37 = arith.mulf %30, %36 : vector<8x128xf32>
    %c0_13 = arith.constant 0 : index
    %c0_14 = arith.constant 0 : index
    %38 = vector.load %arg4[%c0_13, %c0_14] : memref<128x32xf32, #tpu.memory_space<vmem>>, vector<128x32xf32>
    %cst_15 = arith.constant dense<0.000000e+00> : vector<8x32xf32>
    %39 = tpu.matmul %37, %38, %cst_15 {dimension_numbers = #tpu.dot_dimension_numbers<[1], [0], [0], [1], [0, 0, 1, 1], [], []>} : vector<8x128xf32>, vector<128x32xf32>, vector<8x32xf32> -> vector<8x32xf32>
    %c3 = arith.constant 3 : index
    %c0_16 = arith.constant 0 : index
    %40 = vector.load %arg2[%c3, %c0_16] : memref<28x256xf32, #tpu.memory_space<vmem>>, vector<1x32xf32>
    %41 = vector.broadcast %40 : vector<1x32xf32> to vector<8x32xf32>
    %42 = arith.addf %39, %41 : vector<8x32xf32>
    %cst_17 = arith.constant 5.000000e-01 : f32
    %43 = vector.broadcast %cst_17 : f32 to vector<8x32xf32>
    %44 = arith.mulf %43, %42 : vector<8x32xf32>
    %45 = arith.addf %0, %44 : vector<8x32xf32>
    %c4 = arith.constant 4 : index
    %c0_18 = arith.constant 0 : index
    %46 = vector.load %arg2[%c4, %c0_18] : memref<28x256xf32, #tpu.memory_space<vmem>>, vector<1x32xf32>
    %c5 = arith.constant 5 : index
    %c0_19 = arith.constant 0 : index
    %47 = vector.load %arg2[%c5, %c0_19] : memref<28x256xf32, #tpu.memory_space<vmem>>, vector<1x32xf32>
    %cst_20 = arith.constant dense<0.000000e+00> : vector<8xf32>
    %48 = vector.multi_reduction <add>, %45, %cst_20 [1] : vector<8x32xf32> to vector<8xf32>
    %49 = vector.shape_cast %48 : vector<8xf32> to vector<8x1xf32>
    %cst_21 = arith.constant 3.200000e+01 : f32
    %50 = vector.broadcast %cst_21 : f32 to vector<8x1xf32>
    %51 = arith.divf %49, %50 : vector<8x1xf32>
    %52 = vector.broadcast %51 : vector<8x1xf32> to vector<8x32xf32>
    %53 = arith.subf %45, %52 : vector<8x32xf32>
    %54 = arith.mulf %53, %53 : vector<8x32xf32>
    %cst_22 = arith.constant dense<0.000000e+00> : vector<8xf32>
    %55 = vector.multi_reduction <add>, %54, %cst_22 [1] : vector<8x32xf32> to vector<8xf32>
    %56 = vector.shape_cast %55 : vector<8xf32> to vector<8x1xf32>
    %cst_23 = arith.constant 3.200000e+01 : f32
    %57 = vector.broadcast %cst_23 : f32 to vector<8x1xf32>
    %58 = arith.divf %56, %57 : vector<8x1xf32>
    %59 = vector.broadcast %51 : vector<8x1xf32> to vector<8x32xf32>
    %60 = arith.subf %45, %59 : vector<8x32xf32>
    %cst_24 = arith.constant 9.99999974E-6 : f32
    %61 = vector.broadcast %cst_24 : f32 to vector<8x1xf32>
    %62 = arith.addf %58, %61 : vector<8x1xf32>
    %63 = math.rsqrt %62 : vector<8x1xf32>
    %64 = vector.broadcast %63 : vector<8x1xf32> to vector<8x32xf32>
    %65 = arith.mulf %60, %64 : vector<8x32xf32>
    %66 = vector.broadcast %46 : vector<1x32xf32> to vector<8x32xf32>
    %67 = arith.mulf %65, %66 : vector<8x32xf32>
    %68 = vector.broadcast %47 : vector<1x32xf32> to vector<8x32xf32>
    %69 = arith.addf %67, %68 : vector<8x32xf32>
    %c0_25 = arith.constant 0 : index
    %c0_26 = arith.constant 0 : index
    %70 = vector.load %arg5[%c0_25, %c0_26] : memref<32x32xf32, #tpu.memory_space<vmem>>, vector<32x32xf32>
    %cst_27 = arith.constant dense<0.000000e+00> : vector<8x32xf32>
    %71 = tpu.matmul %69, %70, %cst_27 {dimension_numbers = #tpu.dot_dimension_numbers<[1], [0], [0], [1], [0, 0, 1, 1], [], []>} : vector<8x32xf32>, vector<32x32xf32>, vector<8x32xf32> -> vector<8x32xf32>
    %c0_28 = arith.constant 0 : index
    %c0_29 = arith.constant 0 : index
    %72 = vector.load %arg6[%c0_28, %c0_29] : memref<32x32xf32, #tpu.memory_space<vmem>>, vector<32x32xf32>
    %cst_30 = arith.constant dense<0.000000e+00> : vector<8x32xf32>
    %73 = tpu.matmul %69, %72, %cst_30 {dimension_numbers = #tpu.dot_dimension_numbers<[1], [0], [0], [1], [0, 0, 1, 1], [], []>} : vector<8x32xf32>, vector<32x32xf32>, vector<8x32xf32> -> vector<8x32xf32>
    %c0_31 = arith.constant 0 : index
    %c0_32 = arith.constant 0 : index
    %74 = vector.load %arg7[%c0_31, %c0_32] : memref<32x32xf32, #tpu.memory_space<vmem>>, vector<32x32xf32>
    %cst_33 = arith.constant dense<0.000000e+00> : vector<8x32xf32>
    %75 = tpu.matmul %69, %74, %cst_33 {dimension_numbers = #tpu.dot_dimension_numbers<[1], [0], [0], [1], [0, 0, 1, 1], [], []>} : vector<8x32xf32>, vector<32x32xf32>, vector<8x32xf32> -> vector<8x32xf32>
    %76 = vector.shape_cast %71 : vector<8x32xf32> to vector<1x8x32xf32>
    %77 = vector.shape_cast %73 : vector<8x32xf32> to vector<1x8x32xf32>
    %78 = vector.shape_cast %75 : vector<8x32xf32> to vector<1x8x32xf32>
    %79 = vector.extract_strided_slice %76 {offsets = [0, 0, 0], sizes = [1, 8, 8], strides = [1, 1, 1]} : vector<1x8x32xf32> to vector<1x8x8xf32>
    %80 = vector.extract_strided_slice %76 {offsets = [0, 0, 8], sizes = [1, 8, 8], strides = [1, 1, 1]} : vector<1x8x32xf32> to vector<1x8x8xf32>
    %81 = vector.extract_strided_slice %76 {offsets = [0, 0, 16], sizes = [1, 8, 8], strides = [1, 1, 1]} : vector<1x8x32xf32> to vector<1x8x8xf32>
    %82 = vector.extract_strided_slice %76 {offsets = [0, 0, 24], sizes = [1, 8, 8], strides = [1, 1, 1]} : vector<1x8x32xf32> to vector<1x8x8xf32>
    %83 = tpu.concatenate %79, %80, %81, %82 in 0 : vector<1x8x8xf32>, vector<1x8x8xf32>, vector<1x8x8xf32>, vector<1x8x8xf32> -> vector<4x8x8xf32>
    %84 = vector.extract_strided_slice %77 {offsets = [0, 0, 0], sizes = [1, 8, 8], strides = [1, 1, 1]} : vector<1x8x32xf32> to vector<1x8x8xf32>
    %85 = vector.extract_strided_slice %77 {offsets = [0, 0, 8], sizes = [1, 8, 8], strides = [1, 1, 1]} : vector<1x8x32xf32> to vector<1x8x8xf32>
    %86 = vector.extract_strided_slice %77 {offsets = [0, 0, 16], sizes = [1, 8, 8], strides = [1, 1, 1]} : vector<1x8x32xf32> to vector<1x8x8xf32>
    %87 = vector.extract_strided_slice %77 {offsets = [0, 0, 24], sizes = [1, 8, 8], strides = [1, 1, 1]} : vector<1x8x32xf32> to vector<1x8x8xf32>
    %88 = tpu.concatenate %84, %85, %86, %87 in 0 : vector<1x8x8xf32>, vector<1x8x8xf32>, vector<1x8x8xf32>, vector<1x8x8xf32> -> vector<4x8x8xf32>
    %89 = vector.extract_strided_slice %78 {offsets = [0, 0, 0], sizes = [1, 8, 8], strides = [1, 1, 1]} : vector<1x8x32xf32> to vector<1x8x8xf32>
    %90 = vector.extract_strided_slice %78 {offsets = [0, 0, 8], sizes = [1, 8, 8], strides = [1, 1, 1]} : vector<1x8x32xf32> to vector<1x8x8xf32>
    %91 = vector.extract_strided_slice %78 {offsets = [0, 0, 16], sizes = [1, 8, 8], strides = [1, 1, 1]} : vector<1x8x32xf32> to vector<1x8x8xf32>
    %92 = vector.extract_strided_slice %78 {offsets = [0, 0, 24], sizes = [1, 8, 8], strides = [1, 1, 1]} : vector<1x8x32xf32> to vector<1x8x8xf32>
    %93 = tpu.concatenate %89, %90, %91, %92 in 0 : vector<1x8x8xf32>, vector<1x8x8xf32>, vector<1x8x8xf32>, vector<1x8x8xf32> -> vector<4x8x8xf32>
    "tpu.trace_start"() <{level = 10 : i32, message = "bqd,bkd->bqk"}> : () -> ()
    %cst_34 = arith.constant dense<0.000000e+00> : vector<4x8x8xf32>
    %94 = tpu.matmul %83, %88, %cst_34 {dimension_numbers = #tpu.dot_dimension_numbers<[2], [2], [1], [1], [0, 0, 0, 1, 1, 1], [0], [0]>} : vector<4x8x8xf32>, vector<4x8x8xf32>, vector<4x8x8xf32> -> vector<4x8x8xf32>
    "tpu.trace_stop"() : () -> ()
    %cst_35 = arith.constant 0.353553385 : f32
    %95 = vector.broadcast %cst_35 : f32 to vector<4x8x8xf32>
    %96 = arith.mulf %94, %95 : vector<4x8x8xf32>
    %cst_36 = arith.constant dense<0xFF800000> : vector<4x8xf32>
    %97 = vector.multi_reduction <maximumf>, %96, %cst_36 [2] : vector<4x8x8xf32> to vector<4x8xf32>
    %98 = vector.shape_cast %97 : vector<4x8xf32> to vector<4x8x1xf32>
    %99 = vector.broadcast %98 : vector<4x8x1xf32> to vector<4x8x8xf32>
    %100 = arith.subf %96, %99 : vector<4x8x8xf32>
    %101 = math.exp %100 : vector<4x8x8xf32>
    %cst_37 = arith.constant dense<0.000000e+00> : vector<4x8xf32>
    %102 = vector.multi_reduction <add>, %101, %cst_37 [2] : vector<4x8x8xf32> to vector<4x8xf32>
    %103 = vector.shape_cast %102 : vector<4x8xf32> to vector<4x8x1xf32>
    %104 = tpu.reciprocal %103 {approx = true} : vector<4x8x1xf32> -> vector<4x8x1xf32>
    %105 = vector.broadcast %104 : vector<4x8x1xf32> to vector<4x8x8xf32>
    %106 = arith.mulf %101, %105 : vector<4x8x8xf32>
    "tpu.trace_start"() <{level = 10 : i32, message = "bqk,bkd->bqd"}> : () -> ()
    %cst_38 = arith.constant dense<0.000000e+00> : vector<4x8x8xf32>
    %107 = tpu.matmul %106, %93, %cst_38 {dimension_numbers = #tpu.dot_dimension_numbers<[2], [1], [1], [2], [0, 0, 0, 1, 1, 2], [0], [0]>} : vector<4x8x8xf32>, vector<4x8x8xf32>, vector<4x8x8xf32> -> vector<4x8x8xf32>
    "tpu.trace_stop"() : () -> ()
    %c0_39 = arith.constant 0 : index
    %c0_40 = arith.constant 0 : index
    %108 = vector.load %arg8[%c0_39, %c0_40] : memref<32x32xf32, #tpu.memory_space<vmem>>, vector<32x32xf32>
    %cst_41 = arith.constant 0.000000e+00 : f32
    %109 = vector.broadcast %cst_41 : f32 to vector<8x32xf32>
    %110 = vector.extract_strided_slice %107 {offsets = [0, 0, 0], sizes = [1, 8, 8], strides = [1, 1, 1]} : vector<4x8x8xf32> to vector<1x8x8xf32>
    %111 = vector.shape_cast %110 : vector<1x8x8xf32> to vector<8x8xf32>
    %112 = vector.extract_strided_slice %108 {offsets = [0, 0], sizes = [8, 32], strides = [1, 1]} : vector<32x32xf32> to vector<8x32xf32>
    %cst_42 = arith.constant dense<0.000000e+00> : vector<8x32xf32>
    %113 = tpu.matmul %111, %112, %cst_42 {dimension_numbers = #tpu.dot_dimension_numbers<[1], [0], [0], [1], [0, 0, 1, 1], [], []>} : vector<8x8xf32>, vector<8x32xf32>, vector<8x32xf32> -> vector<8x32xf32>
    %114 = arith.addf %109, %113 : vector<8x32xf32>
    %115 = vector.extract_strided_slice %107 {offsets = [1, 0, 0], sizes = [1, 8, 8], strides = [1, 1, 1]} : vector<4x8x8xf32> to vector<1x8x8xf32>
    %116 = vector.shape_cast %115 : vector<1x8x8xf32> to vector<8x8xf32>
    %117 = vector.extract_strided_slice %108 {offsets = [8, 0], sizes = [8, 32], strides = [1, 1]} : vector<32x32xf32> to vector<8x32xf32>
    %cst_43 = arith.constant dense<0.000000e+00> : vector<8x32xf32>
    %118 = tpu.matmul %116, %117, %cst_43 {dimension_numbers = #tpu.dot_dimension_numbers<[1], [0], [0], [1], [0, 0, 1, 1], [], []>} : vector<8x8xf32>, vector<8x32xf32>, vector<8x32xf32> -> vector<8x32xf32>
    %119 = arith.addf %114, %118 : vector<8x32xf32>
    %120 = vector.extract_strided_slice %107 {offsets = [2, 0, 0], sizes = [1, 8, 8], strides = [1, 1, 1]} : vector<4x8x8xf32> to vector<1x8x8xf32>
    %121 = vector.shape_cast %120 : vector<1x8x8xf32> to vector<8x8xf32>
    %122 = vector.extract_strided_slice %108 {offsets = [16, 0], sizes = [8, 32], strides = [1, 1]} : vector<32x32xf32> to vector<8x32xf32>
    %cst_44 = arith.constant dense<0.000000e+00> : vector<8x32xf32>
    %123 = tpu.matmul %121, %122, %cst_44 {dimension_numbers = #tpu.dot_dimension_numbers<[1], [0], [0], [1], [0, 0, 1, 1], [], []>} : vector<8x8xf32>, vector<8x32xf32>, vector<8x32xf32> -> vector<8x32xf32>
    %124 = arith.addf %119, %123 : vector<8x32xf32>
    %125 = vector.extract_strided_slice %107 {offsets = [3, 0, 0], sizes = [1, 8, 8], strides = [1, 1, 1]} : vector<4x8x8xf32> to vector<1x8x8xf32>
    %126 = vector.shape_cast %125 : vector<1x8x8xf32> to vector<8x8xf32>
    %127 = vector.extract_strided_slice %108 {offsets = [24, 0], sizes = [8, 32], strides = [1, 1]} : vector<32x32xf32> to vector<8x32xf32>
    %cst_45 = arith.constant dense<0.000000e+00> : vector<8x32xf32>
    %128 = tpu.matmul %126, %127, %cst_45 {dimension_numbers = #tpu.dot_dimension_numbers<[1], [0], [0], [1], [0, 0, 1, 1], [], []>} : vector<8x8xf32>, vector<8x32xf32>, vector<8x32xf32> -> vector<8x32xf32>
    %129 = arith.addf %124, %128 : vector<8x32xf32>
    %130 = arith.addf %45, %129 : vector<8x32xf32>
    %c6 = arith.constant 6 : index
    %c0_46 = arith.constant 0 : index
    %131 = vector.load %arg2[%c6, %c0_46] : memref<28x256xf32, #tpu.memory_space<vmem>>, vector<1x32xf32>
    %132 = vector.broadcast %131 : vector<1x32xf32> to vector<8x32xf32>
    %133 = arith.addf %130, %132 : vector<8x32xf32>
    %c7 = arith.constant 7 : index
    %c0_47 = arith.constant 0 : index
    %134 = vector.load %arg2[%c7, %c0_47] : memref<28x256xf32, #tpu.memory_space<vmem>>, vector<1x32xf32>
    %c8 = arith.constant 8 : index
    %c0_48 = arith.constant 0 : index
    %135 = vector.load %arg2[%c8, %c0_48] : memref<28x256xf32, #tpu.memory_space<vmem>>, vector<1x32xf32>
    %cst_49 = arith.constant dense<0.000000e+00> : vector<8xf32>
    %136 = vector.multi_reduction <add>, %133, %cst_49 [1] : vector<8x32xf32> to vector<8xf32>
    %137 = vector.shape_cast %136 : vector<8xf32> to vector<8x1xf32>
    %cst_50 = arith.constant 3.200000e+01 : f32
    %138 = vector.broadcast %cst_50 : f32 to vector<8x1xf32>
    %139 = arith.divf %137, %138 : vector<8x1xf32>
    %140 = vector.broadcast %139 : vector<8x1xf32> to vector<8x32xf32>
    %141 = arith.subf %133, %140 : vector<8x32xf32>
    %142 = arith.mulf %141, %141 : vector<8x32xf32>
    %cst_51 = arith.constant dense<0.000000e+00> : vector<8xf32>
    %143 = vector.multi_reduction <add>, %142, %cst_51 [1] : vector<8x32xf32> to vector<8xf32>
    %144 = vector.shape_cast %143 : vector<8xf32> to vector<8x1xf32>
    %cst_52 = arith.constant 3.200000e+01 : f32
    %145 = vector.broadcast %cst_52 : f32 to vector<8x1xf32>
    %146 = arith.divf %144, %145 : vector<8x1xf32>
    %147 = vector.broadcast %139 : vector<8x1xf32> to vector<8x32xf32>
    %148 = arith.subf %133, %147 : vector<8x32xf32>
    %cst_53 = arith.constant 9.99999974E-6 : f32
    %149 = vector.broadcast %cst_53 : f32 to vector<8x1xf32>
    %150 = arith.addf %146, %149 : vector<8x1xf32>
    %151 = math.rsqrt %150 : vector<8x1xf32>
    %152 = vector.broadcast %151 : vector<8x1xf32> to vector<8x32xf32>
    %153 = arith.mulf %148, %152 : vector<8x32xf32>
    %154 = vector.broadcast %134 : vector<1x32xf32> to vector<8x32xf32>
    %155 = arith.mulf %153, %154 : vector<8x32xf32>
    %156 = vector.broadcast %135 : vector<1x32xf32> to vector<8x32xf32>
    %157 = arith.addf %155, %156 : vector<8x32xf32>
    %c0_54 = arith.constant 0 : index
    %c0_55 = arith.constant 0 : index
    %158 = vector.load %arg9[%c0_54, %c0_55] : memref<32x64xf32, #tpu.memory_space<vmem>>, vector<32x64xf32>
    %cst_56 = arith.constant dense<0.000000e+00> : vector<8x64xf32>
    %159 = tpu.matmul %157, %158, %cst_56 {dimension_numbers = #tpu.dot_dimension_numbers<[1], [0], [0], [1], [0, 0, 1, 1], [], []>} : vector<8x32xf32>, vector<32x64xf32>, vector<8x64xf32> -> vector<8x64xf32>
    %c9 = arith.constant 9 : index
    %c0_57 = arith.constant 0 : index
    %160 = vector.load %arg2[%c9, %c0_57] : memref<28x256xf32, #tpu.memory_space<vmem>>, vector<1x64xf32>
    %161 = vector.broadcast %160 : vector<1x64xf32> to vector<8x64xf32>
    %162 = arith.addf %159, %161 : vector<8x64xf32>
    %c0_58 = arith.constant 0 : index
    %c0_59 = arith.constant 0 : index
    %163 = vector.load %arg10[%c0_58, %c0_59] : memref<32x64xf32, #tpu.memory_space<vmem>>, vector<32x64xf32>
    %cst_60 = arith.constant dense<0.000000e+00> : vector<8x64xf32>
    %164 = tpu.matmul %157, %163, %cst_60 {dimension_numbers = #tpu.dot_dimension_numbers<[1], [0], [0], [1], [0, 0, 1, 1], [], []>} : vector<8x32xf32>, vector<32x64xf32>, vector<8x64xf32> -> vector<8x64xf32>
    %c10 = arith.constant 10 : index
    %c0_61 = arith.constant 0 : index
    %165 = vector.load %arg2[%c10, %c0_61] : memref<28x256xf32, #tpu.memory_space<vmem>>, vector<1x64xf32>
    %166 = vector.broadcast %165 : vector<1x64xf32> to vector<8x64xf32>
    %167 = arith.addf %164, %166 : vector<8x64xf32>
    %168 = arith.negf %167 : vector<8x64xf32>
    %169 = math.exp %168 : vector<8x64xf32>
    %cst_62 = arith.constant 1.000000e+00 : f32
    %170 = vector.broadcast %cst_62 : f32 to vector<8x64xf32>
    %171 = arith.addf %170, %169 : vector<8x64xf32>
    %172 = arith.divf %170, %171 : vector<8x64xf32>
    %173 = arith.mulf %162, %172 : vector<8x64xf32>
    %174 = vector.shape_cast %173 : vector<8x64xf32> to vector<1x8x64xf32>
    %cst_63 = arith.constant 0.000000e+00 : f32
    %175 = vector.broadcast %cst_63 : f32 to vector<1x3x64xf32>
    %176 = tpu.concatenate %175, %174, %175 in 1 : vector<1x3x64xf32>, vector<1x8x64xf32>, vector<1x3x64xf32> -> vector<1x14x64xf32>
    %c11 = arith.constant 11 : index
    %c0_64 = arith.constant 0 : index
    %177 = vector.load %arg2[%c11, %c0_64] : memref<28x256xf32, #tpu.memory_space<vmem>>, vector<7x64xf32>
    %cst_65 = arith.constant 0.000000e+00 : f32
    %178 = vector.broadcast %cst_65 : f32 to vector<1x8x64xf32>
    %179 = vector.extract_strided_slice %176 {offsets = [0, 0, 0], sizes = [1, 8, 64], strides = [1, 1, 1]} : vector<1x14x64xf32> to vector<1x8x64xf32>
    %180 = vector.extract_strided_slice %177 {offsets = [0, 0], sizes = [1, 64], strides = [1, 1]} : vector<7x64xf32> to vector<1x64xf32>
    %181 = vector.shape_cast %180 : vector<1x64xf32> to vector<1x1x64xf32>
    %182 = vector.broadcast %181 : vector<1x1x64xf32> to vector<1x8x64xf32>
    %183 = arith.mulf %179, %182 : vector<1x8x64xf32>
    %184 = arith.addf %178, %183 : vector<1x8x64xf32>
    %185 = vector.extract_strided_slice %176 {offsets = [0, 1, 0], sizes = [1, 8, 64], strides = [1, 1, 1]} : vector<1x14x64xf32> to vector<1x8x64xf32>
    %186 = vector.extract_strided_slice %177 {offsets = [1, 0], sizes = [1, 64], strides = [1, 1]} : vector<7x64xf32> to vector<1x64xf32>
    %187 = vector.shape_cast %186 : vector<1x64xf32> to vector<1x1x64xf32>
    %188 = vector.broadcast %187 : vector<1x1x64xf32> to vector<1x8x64xf32>
    %189 = arith.mulf %185, %188 : vector<1x8x64xf32>
    %190 = arith.addf %184, %189 : vector<1x8x64xf32>
    %191 = vector.extract_strided_slice %176 {offsets = [0, 2, 0], sizes = [1, 8, 64], strides = [1, 1, 1]} : vector<1x14x64xf32> to vector<1x8x64xf32>
    %192 = vector.extract_strided_slice %177 {offsets = [2, 0], sizes = [1, 64], strides = [1, 1]} : vector<7x64xf32> to vector<1x64xf32>
    %193 = vector.shape_cast %192 : vector<1x64xf32> to vector<1x1x64xf32>
    %194 = vector.broadcast %193 : vector<1x1x64xf32> to vector<1x8x64xf32>
    %195 = arith.mulf %191, %194 : vector<1x8x64xf32>
    %196 = arith.addf %190, %195 : vector<1x8x64xf32>
    %197 = vector.extract_strided_slice %176 {offsets = [0, 3, 0], sizes = [1, 8, 64], strides = [1, 1, 1]} : vector<1x14x64xf32> to vector<1x8x64xf32>
    %198 = vector.extract_strided_slice %177 {offsets = [3, 0], sizes = [1, 64], strides = [1, 1]} : vector<7x64xf32> to vector<1x64xf32>
    %199 = vector.shape_cast %198 : vector<1x64xf32> to vector<1x1x64xf32>
    %200 = vector.broadcast %199 : vector<1x1x64xf32> to vector<1x8x64xf32>
    %201 = arith.mulf %197, %200 : vector<1x8x64xf32>
    %202 = arith.addf %196, %201 : vector<1x8x64xf32>
    %203 = vector.extract_strided_slice %176 {offsets = [0, 4, 0], sizes = [1, 8, 64], strides = [1, 1, 1]} : vector<1x14x64xf32> to vector<1x8x64xf32>
    %204 = vector.extract_strided_slice %177 {offsets = [4, 0], sizes = [1, 64], strides = [1, 1]} : vector<7x64xf32> to vector<1x64xf32>
    %205 = vector.shape_cast %204 : vector<1x64xf32> to vector<1x1x64xf32>
    %206 = vector.broadcast %205 : vector<1x1x64xf32> to vector<1x8x64xf32>
    %207 = arith.mulf %203, %206 : vector<1x8x64xf32>
    %208 = arith.addf %202, %207 : vector<1x8x64xf32>
    %209 = vector.extract_strided_slice %176 {offsets = [0, 5, 0], sizes = [1, 8, 64], strides = [1, 1, 1]} : vector<1x14x64xf32> to vector<1x8x64xf32>
    %210 = vector.extract_strided_slice %177 {offsets = [5, 0], sizes = [1, 64], strides = [1, 1]} : vector<7x64xf32> to vector<1x64xf32>
    %211 = vector.shape_cast %210 : vector<1x64xf32> to vector<1x1x64xf32>
    %212 = vector.broadcast %211 : vector<1x1x64xf32> to vector<1x8x64xf32>
    %213 = arith.mulf %209, %212 : vector<1x8x64xf32>
    %214 = arith.addf %208, %213 : vector<1x8x64xf32>
    %215 = vector.extract_strided_slice %176 {offsets = [0, 6, 0], sizes = [1, 8, 64], strides = [1, 1, 1]} : vector<1x14x64xf32> to vector<1x8x64xf32>
    %216 = vector.extract_strided_slice %177 {offsets = [6, 0], sizes = [1, 64], strides = [1, 1]} : vector<7x64xf32> to vector<1x64xf32>
    %217 = vector.shape_cast %216 : vector<1x64xf32> to vector<1x1x64xf32>
    %218 = vector.broadcast %217 : vector<1x1x64xf32> to vector<1x8x64xf32>
    %219 = arith.mulf %215, %218 : vector<1x8x64xf32>
    %220 = arith.addf %214, %219 : vector<1x8x64xf32>
    %221 = vector.shape_cast %220 : vector<1x8x64xf32> to vector<8x64xf32>
    %c18 = arith.constant 18 : index
    %c0_66 = arith.constant 0 : index
    %222 = vector.load %arg2[%c18, %c0_66] : memref<28x256xf32, #tpu.memory_space<vmem>>, vector<1x64xf32>
    %223 = vector.broadcast %222 : vector<1x64xf32> to vector<8x64xf32>
    %224 = arith.addf %221, %223 : vector<8x64xf32>
    %c19 = arith.constant 19 : index
    %c0_67 = arith.constant 0 : index
    %225 = vector.load %arg2[%c19, %c0_67] : memref<28x256xf32, #tpu.memory_space<vmem>>, vector<1x64xf32>
    %226 = vector.broadcast %225 : vector<1x64xf32> to vector<8x64xf32>
    %227 = arith.mulf %224, %226 : vector<8x64xf32>
    %c20 = arith.constant 20 : index
    %c0_68 = arith.constant 0 : index
    %228 = vector.load %arg2[%c20, %c0_68] : memref<28x256xf32, #tpu.memory_space<vmem>>, vector<1x64xf32>
    %229 = vector.broadcast %228 : vector<1x64xf32> to vector<8x64xf32>
    %230 = arith.addf %227, %229 : vector<8x64xf32>
    %231 = arith.negf %230 : vector<8x64xf32>
    %232 = math.exp %231 : vector<8x64xf32>
    %cst_69 = arith.constant 1.000000e+00 : f32
    %233 = vector.broadcast %cst_69 : f32 to vector<8x64xf32>
    %234 = arith.addf %233, %232 : vector<8x64xf32>
    %235 = arith.divf %233, %234 : vector<8x64xf32>
    %236 = arith.mulf %230, %235 : vector<8x64xf32>
    %c0_70 = arith.constant 0 : index
    %c0_71 = arith.constant 0 : index
    %237 = vector.load %arg11[%c0_70, %c0_71] : memref<64x32xf32, #tpu.memory_space<vmem>>, vector<64x32xf32>
    %cst_72 = arith.constant dense<0.000000e+00> : vector<8x32xf32>
    %238 = tpu.matmul %236, %237, %cst_72 {dimension_numbers = #tpu.dot_dimension_numbers<[1], [0], [0], [1], [0, 0, 1, 1], [], []>} : vector<8x64xf32>, vector<64x32xf32>, vector<8x32xf32> -> vector<8x32xf32>
    %239 = arith.addf %133, %238 : vector<8x32xf32>
    %c21 = arith.constant 21 : index
    %c0_73 = arith.constant 0 : index
    %240 = vector.load %arg2[%c21, %c0_73] : memref<28x256xf32, #tpu.memory_space<vmem>>, vector<1x32xf32>
    %241 = vector.broadcast %240 : vector<1x32xf32> to vector<8x32xf32>
    %242 = arith.addf %239, %241 : vector<8x32xf32>
    %c22 = arith.constant 22 : index
    %c0_74 = arith.constant 0 : index
    %243 = vector.load %arg2[%c22, %c0_74] : memref<28x256xf32, #tpu.memory_space<vmem>>, vector<1x32xf32>
    %c23 = arith.constant 23 : index
    %c0_75 = arith.constant 0 : index
    %244 = vector.load %arg2[%c23, %c0_75] : memref<28x256xf32, #tpu.memory_space<vmem>>, vector<1x32xf32>
    %cst_76 = arith.constant dense<0.000000e+00> : vector<8xf32>
    %245 = vector.multi_reduction <add>, %242, %cst_76 [1] : vector<8x32xf32> to vector<8xf32>
    %246 = vector.shape_cast %245 : vector<8xf32> to vector<8x1xf32>
    %cst_77 = arith.constant 3.200000e+01 : f32
    %247 = vector.broadcast %cst_77 : f32 to vector<8x1xf32>
    %248 = arith.divf %246, %247 : vector<8x1xf32>
    %249 = vector.broadcast %248 : vector<8x1xf32> to vector<8x32xf32>
    %250 = arith.subf %242, %249 : vector<8x32xf32>
    %251 = arith.mulf %250, %250 : vector<8x32xf32>
    %cst_78 = arith.constant dense<0.000000e+00> : vector<8xf32>
    %252 = vector.multi_reduction <add>, %251, %cst_78 [1] : vector<8x32xf32> to vector<8xf32>
    %253 = vector.shape_cast %252 : vector<8xf32> to vector<8x1xf32>
    %cst_79 = arith.constant 3.200000e+01 : f32
    %254 = vector.broadcast %cst_79 : f32 to vector<8x1xf32>
    %255 = arith.divf %253, %254 : vector<8x1xf32>
    %256 = vector.broadcast %248 : vector<8x1xf32> to vector<8x32xf32>
    %257 = arith.subf %242, %256 : vector<8x32xf32>
    %cst_80 = arith.constant 9.99999974E-6 : f32
    %258 = vector.broadcast %cst_80 : f32 to vector<8x1xf32>
    %259 = arith.addf %255, %258 : vector<8x1xf32>
    %260 = math.rsqrt %259 : vector<8x1xf32>
    %261 = vector.broadcast %260 : vector<8x1xf32> to vector<8x32xf32>
    %262 = arith.mulf %257, %261 : vector<8x32xf32>
    %263 = vector.broadcast %243 : vector<1x32xf32> to vector<8x32xf32>
    %264 = arith.mulf %262, %263 : vector<8x32xf32>
    %265 = vector.broadcast %244 : vector<1x32xf32> to vector<8x32xf32>
    %266 = arith.addf %264, %265 : vector<8x32xf32>
    %c0_81 = arith.constant 0 : index
    %c0_82 = arith.constant 0 : index
    %267 = vector.load %arg12[%c0_81, %c0_82] : memref<32x256xf32, #tpu.memory_space<vmem>>, vector<32x256xf32>
    %cst_83 = arith.constant dense<0.000000e+00> : vector<8x256xf32>
    %268 = tpu.matmul %266, %267, %cst_83 {dimension_numbers = #tpu.dot_dimension_numbers<[1], [0], [0], [1], [0, 0, 1, 1], [], []>} : vector<8x32xf32>, vector<32x256xf32>, vector<8x256xf32> -> vector<8x256xf32>
    %c24 = arith.constant 24 : index
    %c0_84 = arith.constant 0 : index
    %269 = vector.load %arg2[%c24, %c0_84] : memref<28x256xf32, #tpu.memory_space<vmem>>, vector<1x256xf32>
    %270 = vector.broadcast %269 : vector<1x256xf32> to vector<8x256xf32>
    %271 = arith.addf %268, %270 : vector<8x256xf32>
    %272 = vector.extract_strided_slice %271 {offsets = [0, 0], sizes = [8, 128], strides = [1, 1]} : vector<8x256xf32> to vector<8x128xf32>
    %273 = vector.extract_strided_slice %271 {offsets = [0, 128], sizes = [8, 128], strides = [1, 1]} : vector<8x256xf32> to vector<8x128xf32>
    %274 = arith.negf %273 : vector<8x128xf32>
    %275 = math.exp %274 : vector<8x128xf32>
    %cst_85 = arith.constant 1.000000e+00 : f32
    %276 = vector.broadcast %cst_85 : f32 to vector<8x128xf32>
    %277 = arith.addf %276, %275 : vector<8x128xf32>
    %278 = arith.divf %276, %277 : vector<8x128xf32>
    %279 = arith.mulf %272, %278 : vector<8x128xf32>
    %c0_86 = arith.constant 0 : index
    %c0_87 = arith.constant 0 : index
    %280 = vector.load %arg13[%c0_86, %c0_87] : memref<128x32xf32, #tpu.memory_space<vmem>>, vector<128x32xf32>
    %cst_88 = arith.constant dense<0.000000e+00> : vector<8x32xf32>
    %281 = tpu.matmul %279, %280, %cst_88 {dimension_numbers = #tpu.dot_dimension_numbers<[1], [0], [0], [1], [0, 0, 1, 1], [], []>} : vector<8x128xf32>, vector<128x32xf32>, vector<8x32xf32> -> vector<8x32xf32>
    %c25 = arith.constant 25 : index
    %c0_89 = arith.constant 0 : index
    %282 = vector.load %arg2[%c25, %c0_89] : memref<28x256xf32, #tpu.memory_space<vmem>>, vector<1x32xf32>
    %283 = vector.broadcast %282 : vector<1x32xf32> to vector<8x32xf32>
    %284 = arith.addf %281, %283 : vector<8x32xf32>
    %cst_90 = arith.constant 5.000000e-01 : f32
    %285 = vector.broadcast %cst_90 : f32 to vector<8x32xf32>
    %286 = arith.mulf %285, %284 : vector<8x32xf32>
    %287 = arith.addf %242, %286 : vector<8x32xf32>
    %c26 = arith.constant 26 : index
    %c0_91 = arith.constant 0 : index
    %288 = vector.load %arg2[%c26, %c0_91] : memref<28x256xf32, #tpu.memory_space<vmem>>, vector<1x32xf32>
    %c27 = arith.constant 27 : index
    %c0_92 = arith.constant 0 : index
    %289 = vector.load %arg2[%c27, %c0_92] : memref<28x256xf32, #tpu.memory_space<vmem>>, vector<1x32xf32>
    %cst_93 = arith.constant dense<0.000000e+00> : vector<8xf32>
    %290 = vector.multi_reduction <add>, %287, %cst_93 [1] : vector<8x32xf32> to vector<8xf32>
    %291 = vector.shape_cast %290 : vector<8xf32> to vector<8x1xf32>
    %cst_94 = arith.constant 3.200000e+01 : f32
    %292 = vector.broadcast %cst_94 : f32 to vector<8x1xf32>
    %293 = arith.divf %291, %292 : vector<8x1xf32>
    %294 = vector.broadcast %293 : vector<8x1xf32> to vector<8x32xf32>
    %295 = arith.subf %287, %294 : vector<8x32xf32>
    %296 = arith.mulf %295, %295 : vector<8x32xf32>
    %cst_95 = arith.constant dense<0.000000e+00> : vector<8xf32>
    %297 = vector.multi_reduction <add>, %296, %cst_95 [1] : vector<8x32xf32> to vector<8xf32>
    %298 = vector.shape_cast %297 : vector<8xf32> to vector<8x1xf32>
    %cst_96 = arith.constant 3.200000e+01 : f32
    %299 = vector.broadcast %cst_96 : f32 to vector<8x1xf32>
    %300 = arith.divf %298, %299 : vector<8x1xf32>
    %301 = vector.broadcast %293 : vector<8x1xf32> to vector<8x32xf32>
    %302 = arith.subf %287, %301 : vector<8x32xf32>
    %cst_97 = arith.constant 9.99999974E-6 : f32
    %303 = vector.broadcast %cst_97 : f32 to vector<8x1xf32>
    %304 = arith.addf %300, %303 : vector<8x1xf32>
    %305 = math.rsqrt %304 : vector<8x1xf32>
    %306 = vector.broadcast %305 : vector<8x1xf32> to vector<8x32xf32>
    %307 = arith.mulf %302, %306 : vector<8x32xf32>
    %308 = vector.broadcast %288 : vector<1x32xf32> to vector<8x32xf32>
    %309 = arith.mulf %307, %308 : vector<8x32xf32>
    %310 = vector.broadcast %289 : vector<1x32xf32> to vector<8x32xf32>
    %311 = arith.addf %309, %310 : vector<8x32xf32>
    %c0_98 = arith.constant 0 : index
    %c0_99 = arith.constant 0 : index
    %312 = vector.load %arg14[%c0_98, %c0_99] : memref<8x32xf32, #tpu.memory_space<vmem>>, vector<8x32xf32>
    tpu.vector_store %arg14[%c0_98, %c0_99], %311 {strides = array<i32>} : memref<8x32xf32, #tpu.memory_space<vmem>>, vector<8x32xf32>,
    return
  }
  func.func @transform_0(%arg0: i32) -> (i32, i32) {
    %c0_i32 = arith.constant 0 : i32
    %c0_i32_0 = arith.constant 0 : i32
    return %arg0, %c0_i32 : i32, i32
  }
  func.func @transform_1(%arg0: i32) -> (i32, i32) {
    %c0_i32 = arith.constant 0 : i32
    %c0_i32_0 = arith.constant 0 : i32
    %c0_i32_1 = arith.constant 0 : i32
    return %c0_i32, %c0_i32_0 : i32, i32
  }
  func.func @transform_2(%arg0: i32) -> (i32, i32) {
    %c0_i32 = arith.constant 0 : i32
    %c0_i32_0 = arith.constant 0 : i32
    %c0_i32_1 = arith.constant 0 : i32
    return %c0_i32, %c0_i32_0 : i32, i32
  }
  func.func @transform_3(%arg0: i32) -> (i32, i32) {
    %c0_i32 = arith.constant 0 : i32
    %c0_i32_0 = arith.constant 0 : i32
    %c0_i32_1 = arith.constant 0 : i32
    return %c0_i32, %c0_i32_0 : i32, i32
  }
  func.func @transform_4(%arg0: i32) -> (i32, i32) {
    %c0_i32 = arith.constant 0 : i32
    %c0_i32_0 = arith.constant 0 : i32
    %c0_i32_1 = arith.constant 0 : i32
    return %c0_i32, %c0_i32_0 : i32, i32
  }
  func.func @transform_5(%arg0: i32) -> (i32, i32) {
    %c0_i32 = arith.constant 0 : i32
    %c0_i32_0 = arith.constant 0 : i32
    %c0_i32_1 = arith.constant 0 : i32
    return %c0_i32, %c0_i32_0 : i32, i32
  }
  func.func @transform_6(%arg0: i32) -> (i32, i32) {
    %c0_i32 = arith.constant 0 : i32
    %c0_i32_0 = arith.constant 0 : i32
    %c0_i32_1 = arith.constant 0 : i32
    return %c0_i32, %c0_i32_0 : i32, i32
  }
  func.func @transform_7(%arg0: i32) -> (i32, i32) {
    %c0_i32 = arith.constant 0 : i32
    %c0_i32_0 = arith.constant 0 : i32
    %c0_i32_1 = arith.constant 0 : i32
    return %c0_i32, %c0_i32_0 : i32, i32
  }
  func.func @transform_8(%arg0: i32) -> (i32, i32) {
    %c0_i32 = arith.constant 0 : i32
    %c0_i32_0 = arith.constant 0 : i32
    %c0_i32_1 = arith.constant 0 : i32
    return %c0_i32, %c0_i32_0 : i32, i32
  }
  func.func @transform_9(%arg0: i32) -> (i32, i32) {
    %c0_i32 = arith.constant 0 : i32
    %c0_i32_0 = arith.constant 0 : i32
    %c0_i32_1 = arith.constant 0 : i32
    return %c0_i32, %c0_i32_0 : i32, i32
  }
  func.func @transform_10(%arg0: i32) -> (i32, i32) {
    %c0_i32 = arith.constant 0 : i32
    %c0_i32_0 = arith.constant 0 : i32
    %c0_i32_1 = arith.constant 0 : i32
    return %c0_i32, %c0_i32_0 : i32, i32
  }
  func.func @transform_11(%arg0: i32) -> (i32, i32) {
    %c0_i32 = arith.constant 0 : i32
    %c0_i32_0 = arith.constant 0 : i32
    %c0_i32_1 = arith.constant 0 : i32
    return %c0_i32, %c0_i32_0 : i32, i32
  }
  func.func @transform_12(%arg0: i32) -> (i32, i32) {
    %c0_i32 = arith.constant 0 : i32
    %c0_i32_0 = arith.constant 0 : i32
    %c0_i32_1 = arith.constant 0 : i32
    return %c0_i32, %c0_i32_0 : i32, i32
  }
  func.func @transform_13(%arg0: i32) -> (i32, i32) {
    %c0_i32 = arith.constant 0 : i32
    %c0_i32_0 = arith.constant 0 : i32
    return %arg0, %c0_i32 : i32, i32
  }
}

</mosaic_0001>

<llo_original>
// kernel: conformer_block_pallas.1
$region0: #{conformer_block_pallas.1}
  #allocation0 [shape = 'u32[]', space=smem, size = 0x4, offset = 0x4, fixed_abs, tag = 'smem constant byte address 0x4 - core index']
  #allocation1 [shape = 'u32[72,128]{1,0:T(1,128)}', space=vmem, size = 0x9000, scoped, tag = 'internal scratch']
  %s0 = inlined_call_operand.vmem [shape: f32[16,32], index: 0, kind: input, shape index: {}]
  %s1 = inlined_call_operand.vmem [shape: f32[28,256], index: 1, kind: input, shape index: {}]
  %s2 = inlined_call_operand.vmem [shape: f32[32,256], index: 2, kind: input, shape index: {}]
  %s3 = inlined_call_operand.vmem [shape: f32[128,32], index: 3, kind: input, shape index: {}]
  %s4 = inlined_call_operand.vmem [shape: f32[32,32], index: 4, kind: input, shape index: {}]
  %s5 = inlined_call_operand.vmem [shape: f32[32,32], index: 5, kind: input, shape index: {}]
  %s6 = inlined_call_operand.vmem [shape: f32[32,32], index: 6, kind: input, shape index: {}]
  %s7 = inlined_call_operand.vmem [shape: f32[32,32], index: 7, kind: input, shape index: {}]
  %s8 = inlined_call_operand.vmem [shape: f32[32,64], index: 8, kind: input, shape index: {}]
  %s9 = inlined_call_operand.vmem [shape: f32[32,64], index: 9, kind: input, shape index: {}]
  %s10 = inlined_call_operand.vmem [shape: f32[64,32], index: 10, kind: input, shape index: {}]
  %s11 = inlined_call_operand.vmem [shape: f32[32,256], index: 11, kind: input, shape index: {}]
  %s12 = inlined_call_operand.vmem [shape: f32[128,32], index: 12, kind: input, shape index: {}]
  %s13 = inlined_call_operand.hbm [shape: f32[16,32], index: 13, kind: output, shape index: {}]
  %s14 = sld [smem:[#allocation0]]
  $region85: #{conformer_block_pallas.1} parent=0
    _
  %s16 = ssub.s32 1, %s14
  %s17 = scalar_select 0, %s16, %s14
  $region1: #{conformer_block_pallas.1} parent=0
    #allocation2 [shape = 'u8[8192]{0}', space=vmem, size = 0x2000, scoped, tag = 'output window, operand 0']
    #allocation3 [shape = 's32[2]{0}', space=sflag, size = 0x8, scoped, tag = 'scoped memory for conformer_block_pallas.1']
    %18 = vsyncpa [#allocation3], 0
    %s19 = scalar_lea.sflag [#allocation3], 1
    %20 = vsyncpa %s19, 0
    loop: start=0, step=1, limit=4
    $region2: #{conformer_block_pallas.1} parent=1 // loop_pre_header
      _
    $region3: #{conformer_block_pallas.1} parent=1 // loop_header
      %s22 = sphi 0, %s26
      %p23 = scmp.ge.s32.totalorder %s22, 4
      %s32 = sphi 0, %s34
      %s35 = sphi 0, %s32
      %s36 = sphi 0, %s35
      %s52 = sphi 0, %s36
      %s56 = sphi 0, %s56
      %s58 = sphi 0, %s56
      %s59 = sphi 0, %s58
      %s73 = sphi 0, %s59
      %s77 = sphi 0, %s77
      %s79 = sphi 0, %s77
      %s80 = sphi 0, %s79
      %s94 = sphi 0, %s80
      %s98 = sphi 0, %s98
      %s100 = sphi 0, %s98
      %s101 = sphi 0, %s100
      %s115 = sphi 0, %s101
      %s119 = sphi 0, %s119
      %s121 = sphi 0, %s119
      %s122 = sphi 0, %s121
      %s136 = sphi 0, %s122
      %s140 = sphi 0, %s140
      %s142 = sphi 0, %s140
      %s143 = sphi 0, %s142
      %s157 = sphi 0, %s143
      %s161 = sphi 0, %s161
      %s163 = sphi 0, %s161
      %s164 = sphi 0, %s163
      %s178 = sphi 0, %s164
      %s182 = sphi 0, %s182
      %s184 = sphi 0, %s182
      %s185 = sphi 0, %s184
      %s199 = sphi 0, %s185
      %s203 = sphi 0, %s203
      %s205 = sphi 0, %s203
      %s206 = sphi 0, %s205
      %s220 = sphi 0, %s206
      %s224 = sphi 0, %s224
      %s226 = sphi 0, %s224
      %s227 = sphi 0, %s226
      %s241 = sphi 0, %s227
      %s245 = sphi 0, %s245
      %s247 = sphi 0, %s245
      %s248 = sphi 0, %s247
      %s262 = sphi 0, %s248
      %s266 = sphi 0, %s266
      %s268 = sphi 0, %s266
      %s269 = sphi 0, %s268
      %s283 = sphi 0, %s269
      %s287 = sphi 0, %s287
      %s289 = sphi 0, %s287
      %s290 = sphi 0, %s289
      %s304 = sphi 0, %s290
      %s310 = sphi 0, %s312
      %s313 = sphi 0, %s310
      %s314 = sphi 0, %s313
      %s330 = sphi 0, %s314
    $region4: #{conformer_block_pallas.1} parent=1 // loop_header_branch
      %25 = sbr.rel (%p23) target = $region8
    $region5: #{conformer_block_pallas.1} parent=1 // loop_body
      %s27 = ssub.s32 %s22, 1
      %s28 = ssub.s32 %s22, 2
      %s29 = sadd.s32 %s22, 1
      %s30 = ssub.s32 %s22, %s29
      %p31 = scmp.eq.s32.totalorder %s30, 0
      %s33 = sadd.s32 %s32, 1
      %s34 = scalar_select %p31, %s32, %s33
      %p37 = pneg %p31
      %p38 = scmp.eq.s32.totalorder %s22, 1
      %p39 = por %p37, %p38
      %p40 = scmp.ne.s32.totalorder %s32, %s35
      %p41 = scmp.eq.s32.totalorder %s22, 0
      %p42 = por %p40, %p41
      %p43 = scmp.ne.s32.totalorder %s32, %s35
      %p44 = scmp.eq.s32.totalorder %s27, 1
      %p45 = por %p43, %p44
      %p46 = scmp.ne.s32.totalorder %s35, %s36
      %p47 = scmp.eq.s32.totalorder %s27, 0
      %p48 = por %p46, %p47
      %p49 = scmp.ne.s32.totalorder %s35, %s36
      %p50 = scmp.eq.s32.totalorder %s28, 1
      %p51 = por %p49, %p50
      %p53 = scmp.ne.s32.totalorder %s36, %s52
      %p54 = scmp.eq.s32.totalorder %s28, 0
      %p55 = por %p53, %p54
      %s57 = sadd.s32 %s56, 1
      %p60 = scmp.eq.s32.totalorder %s22, 1
      %p61 = scmp.ne.s32.totalorder %s56, %s58
      %p62 = scmp.eq.s32.totalorder %s22, 0
      %p63 = por %p61, %p62
      %p64 = scmp.ne.s32.totalorder %s56, %s58
      %p65 = scmp.eq.s32.totalorder %s27, 1
      %p66 = por %p64, %p65
      %p67 = scmp.ne.s32.totalorder %s58, %s59
      %p68 = scmp.eq.s32.totalorder %s27, 0
      %p69 = por %p67, %p68
      %p70 = scmp.ne.s32.totalorder %s58, %s59
      %p71 = scmp.eq.s32.totalorder %s28, 1
      %p72 = por %p70, %p71
      %p74 = scmp.ne.s32.totalorder %s59, %s73
      %p75 = scmp.eq.s32.totalorder %s28, 0
      %p76 = por %p74, %p75
      %s78 = sadd.s32 %s77, 1
      %p81 = scmp.eq.s32.totalorder %s22, 1
      %p82 = scmp.ne.s32.totalorder %s77, %s79
      %p83 = scmp.eq.s32.totalorder %s22, 0
      %p84 = por %p82, %p83
      %p85 = scmp.ne.s32.totalorder %s77, %s79
      %p86 = scmp.eq.s32.totalorder %s27, 1
      %p87 = por %p85, %p86
      %p88 = scmp.ne.s32.totalorder %s79, %s80
      %p89 = scmp.eq.s32.totalorder %s27, 0
      %p90 = por %p88, %p89
      %p91 = scmp.ne.s32.totalorder %s79, %s80
      %p92 = scmp.eq.s32.totalorder %s28, 1
      %p93 = por %p91, %p92
      %p95 = scmp.ne.s32.totalorder %s80, %s94
      %p96 = scmp.eq.s32.totalorder %s28, 0
      %p97 = por %p95, %p96
      %s99 = sadd.s32 %s98, 1
      %p102 = scmp.eq.s32.totalorder %s22, 1
      %p103 = scmp.ne.s32.totalorder %s98, %s100
      %p104 = scmp.eq.s32.totalorder %s22, 0
      %p105 = por %p103, %p104
      %p106 = scmp.ne.s32.totalorder %s98, %s100
      %p107 = scmp.eq.s32.totalorder %s27, 1
      %p108 = por %p106, %p107
      %p109 = scmp.ne.s32.totalorder %s100, %s101
      %p110 = scmp.eq.s32.totalorder %s27, 0
      %p111 = por %p109, %p110
      %p112 = scmp.ne.s32.totalorder %s100, %s101
      %p113 = scmp.eq.s32.totalorder %s28, 1
      %p114 = por %p112, %p113
      %p116 = scmp.ne.s32.totalorder %s101, %s115
      %p117 = scmp.eq.s32.totalorder %s28, 0
      %p118 = por %p116, %p117
      %s120 = sadd.s32 %s119, 1
      %p123 = scmp.eq.s32.totalorder %s22, 1
      %p124 = scmp.ne.s32.totalorder %s119, %s121
      %p125 = scmp.eq.s32.totalorder %s22, 0
      %p126 = por %p124, %p125
      %p127 = scmp.ne.s32.totalorder %s119, %s121
      %p128 = scmp.eq.s32.totalorder %s27, 1
      %p129 = por %p127, %p128
      %p130 = scmp.ne.s32.totalorder %s121, %s122
      %p131 = scmp.eq.s32.totalorder %s27, 0
      %p132 = por %p130, %p131
      %p133 = scmp.ne.s32.totalorder %s121, %s122
      %p134 = scmp.eq.s32.totalorder %s28, 1
      %p135 = por %p133, %p134
      %p137 = scmp.ne.s32.totalorder %s122, %s136
      %p138 = scmp.eq.s32.totalorder %s28, 0
      %p139 = por %p137, %p138
      %s141 = sadd.s32 %s140, 1
      %p144 = scmp.eq.s32.totalorder %s22, 1
      %p145 = scmp.ne.s32.totalorder %s140, %s142
      %p146 = scmp.eq.s32.totalorder %s22, 0
      %p147 = por %p145, %p146
      %p148 = scmp.ne.s32.totalorder %s140, %s142
      %p149 = scmp.eq.s32.totalorder %s27, 1
      %p150 = por %p148, %p149
      %p151 = scmp.ne.s32.totalorder %s142, %s143
      %p152 = scmp.eq.s32.totalorder %s27, 0
      %p153 = por %p151, %p152
      %p154 = scmp.ne.s32.totalorder %s142, %s143
      %p155 = scmp.eq.s32.totalorder %s28, 1
      %p156 = por %p154, %p155
      %p158 = scmp.ne.s32.totalorder %s143, %s157
      %p159 = scmp.eq.s32.totalorder %s28, 0
      %p160 = por %p158, %p159
      %s162 = sadd.s32 %s161, 1
      %p165 = scmp.eq.s32.totalorder %s22, 1
      %p166 = scmp.ne.s32.totalorder %s161, %s163
      %p167 = scmp.eq.s32.totalorder %s22, 0
      %p168 = por %p166, %p167
      %p169 = scmp.ne.s32.totalorder %s161, %s163
      %p170 = scmp.eq.s32.totalorder %s27, 1
      %p171 = por %p169, %p170
      %p172 = scmp.ne.s32.totalorder %s163, %s164
      %p173 = scmp.eq.s32.totalorder %s27, 0
      %p174 = por %p172, %p173
      %p175 = scmp.ne.s32.totalorder %s163, %s164
      %p176 = scmp.eq.s32.totalorder %s28, 1
      %p177 = por %p175, %p176
      %p179 = scmp.ne.s32.totalorder %s164, %s178
      %p180 = scmp.eq.s32.totalorder %s28, 0
      %p181 = por %p179, %p180
      %s183 = sadd.s32 %s182, 1
      %p186 = scmp.eq.s32.totalorder %s22, 1
      %p187 = scmp.ne.s32.totalorder %s182, %s184
      %p188 = scmp.eq.s32.totalorder %s22, 0
      %p189 = por %p187, %p188
      %p190 = scmp.ne.s32.totalorder %s182, %s184
      %p191 = scmp.eq.s32.totalorder %s27, 1
      %p192 = por %p190, %p191
      %p193 = scmp.ne.s32.totalorder %s184, %s185
      %p194 = scmp.eq.s32.totalorder %s27, 0
      %p195 = por %p193, %p194
      %p196 = scmp.ne.s32.totalorder %s184, %s185
      %p197 = scmp.eq.s32.totalorder %s28, 1
      %p198 = por %p196, %p197
      %p200 = scmp.ne.s32.totalorder %s185, %s199
      %p201 = scmp.eq.s32.totalorder %s28, 0
      %p202 = por %p200, %p201
      %s204 = sadd.s32 %s203, 1
      %p207 = scmp.eq.s32.totalorder %s22, 1
      %p208 = scmp.ne.s32.totalorder %s203, %s205
      %p209 = scmp.eq.s32.totalorder %s22, 0
      %p210 = por %p208, %p209
      %p211 = scmp.ne.s32.totalorder %s203, %s205
      %p212 = scmp.eq.s32.totalorder %s27, 1
      %p213 = por %p211, %p212
      %p214 = scmp.ne.s32.totalorder %s205, %s206
      %p215 = scmp.eq.s32.totalorder %s27, 0
      %p216 = por %p214, %p215
      %p217 = scmp.ne.s32.totalorder %s205, %s206
      %p218 = scmp.eq.s32.totalorder %s28, 1
      %p219 = por %p217, %p218
      %p221 = scmp.ne.s32.totalorder %s206, %s220
      %p222 = scmp.eq.s32.totalorder %s28, 0
      %p223 = por %p221, %p222
      %s225 = sadd.s32 %s224, 1
      %p228 = scmp.eq.s32.totalorder %s22, 1
      %p229 = scmp.ne.s32.totalorder %s224, %s226
      %p230 = scmp.eq.s32.totalorder %s22, 0
      %p231 = por %p229, %p230
      %p232 = scmp.ne.s32.totalorder %s224, %s226
      %p233 = scmp.eq.s32.totalorder %s27, 1
      %p234 = por %p232, %p233
      %p235 = scmp.ne.s32.totalorder %s226, %s227
      %p236 = scmp.eq.s32.totalorder %s27, 0
      %p237 = por %p235, %p236
      %p238 = scmp.ne.s32.totalorder %s226, %s227
      %p239 = scmp.eq.s32.totalorder %s28, 1
      %p240 = por %p238, %p239
      %p242 = scmp.ne.s32.totalorder %s227, %s241
      %p243 = scmp.eq.s32.totalorder %s28, 0
      %p244 = por %p242, %p243
      %s246 = sadd.s32 %s245, 1
      %p249 = scmp.eq.s32.totalorder %s22, 1
      %p250 = scmp.ne.s32.totalorder %s245, %s247
      %p251 = scmp.eq.s32.totalorder %s22, 0
      %p252 = por %p250, %p251
      %p253 = scmp.ne.s32.totalorder %s245, %s247
      %p254 = scmp.eq.s32.totalorder %s27, 1
      %p255 = por %p253, %p254
      %p256 = scmp.ne.s32.totalorder %s247, %s248
      %p257 = scmp.eq.s32.totalorder %s27, 0
      %p258 = por %p256, %p257
      %p259 = scmp.ne.s32.totalorder %s247, %s248
      %p260 = scmp.eq.s32.totalorder %s28, 1
      %p261 = por %p259, %p260
      %p263 = scmp.ne.s32.totalorder %s248, %s262
      %p264 = scmp.eq.s32.totalorder %s28, 0
      %p265 = por %p263, %p264
      %s267 = sadd.s32 %s266, 1
      %p270 = scmp.eq.s32.totalorder %s22, 1
      %p271 = scmp.ne.s32.totalorder %s266, %s268
      %p272 = scmp.eq.s32.totalorder %s22, 0
      %p273 = por %p271, %p272
      %p274 = scmp.ne.s32.totalorder %s266, %s268
      %p275 = scmp.eq.s32.totalorder %s27, 1
      %p276 = por %p274, %p275
      %p277 = scmp.ne.s32.totalorder %s268, %s269
      %p278 = scmp.eq.s32.totalorder %s27, 0
      %p279 = por %p277, %p278
      %p280 = scmp.ne.s32.totalorder %s268, %s269
      %p281 = scmp.eq.s32.totalorder %s28, 1
      %p282 = por %p280, %p281
      %p284 = scmp.ne.s32.totalorder %s269, %s283
      %p285 = scmp.eq.s32.totalorder %s28, 0
      %p286 = por %p284, %p285
      %s288 = sadd.s32 %s287, 1
      %p291 = scmp.eq.s32.totalorder %s22, 1
      %p292 = scmp.ne.s32.totalorder %s287, %s289
      %p293 = scmp.eq.s32.totalorder %s22, 0
      %p294 = por %p292, %p293
      %p295 = scmp.ne.s32.totalorder %s287, %s289
      %p296 = scmp.eq.s32.totalorder %s27, 1
      %p297 = por %p295, %p296
      %p298 = scmp.ne.s32.totalorder %s289, %s290
      %p299 = scmp.eq.s32.totalorder %s27, 0
      %p300 = por %p298, %p299
      %p301 = scmp.ne.s32.totalorder %s289, %s290
      %p302 = scmp.eq.s32.totalorder %s28, 1
      %p303 = por %p301, %p302
      %p305 = scmp.ne.s32.totalorder %s290, %s304
      %p306 = scmp.eq.s32.totalorder %s28, 0
      %p307 = por %p305, %p306
      %s308 = ssub.s32 %s22, %s29
      %p309 = scmp.eq.s32.totalorder %s308, 0
      %s311 = sadd.s32 %s310, 1
      %s312 = scalar_select %p309, %s310, %s311
      %p315 = pneg %p309
      %p316 = scmp.eq.s32.totalorder %s22, 1
      %p317 = por %p315, %p316
      %p318 = scmp.ne.s32.totalorder %s310, %s313
      %p319 = scmp.eq.s32.totalorder %s22, 0
      %p320 = por %p318, %p319
      %p321 = scmp.ne.s32.totalorder %s310, %s313
      %p322 = scmp.eq.s32.totalorder %s27, 1
      %p323 = por %p321, %p322
      %p324 = scmp.ne.s32.totalorder %s313, %s314
      %p325 = scmp.eq.s32.totalorder %s27, 0
      %p326 = por %p324, %p325
      %p327 = scmp.ne.s32.totalorder %s313, %s314
      %p328 = scmp.eq.s32.totalorder %s28, 1
      %p329 = por %p327, %p328
      %p331 = scmp.ne.s32.totalorder %s314, %s330
      %p332 = scmp.eq.s32.totalorder %s28, 0
      %p333 = por %p331, %p332
      %p334 = scmp.le.s32.totalorder 1, %s22
      %p335 = scmp.lt.s32.totalorder %s22, 3
      %p336 = pnand %p334, %p335
      %p337 = pneg %p336
      // Predicated region
      $region9: #{conformer_block_pallas.1} parent=5 // pred_check
        _
      $region10: #{conformer_block_pallas.1} parent=5 // pred_check_branch
        %339 = sbr.rel (%p336) target = $region12
      $region11: #{conformer_block_pallas.1} parent=5 // pred_region
        %s340 = ssub.s32 %s22, 1
        // Predicated region
        $region13: #{conformer_block_pallas.1} parent=11 // pred_check
          %p341 = pneg %p69
        $region14: #{conformer_block_pallas.1} parent=11 // pred_check_branch
          %343 = sbr.rel (%p341) target = $region16
        $region15: #{conformer_block_pallas.1} parent=11 // pred_region
          _
        $region16: #{conformer_block_pallas.1} parent=11 // pred_fallthru
          _
        // Predicated region
        $region17: #{conformer_block_pallas.1} parent=11 // pred_check
          %p344 = pneg %p90
        $region18: #{conformer_block_pallas.1} parent=11 // pred_check_branch
          %346 = sbr.rel (%p344) target = $region20
        $region19: #{conformer_block_pallas.1} parent=11 // pred_region
          _
        $region20: #{conformer_block_pallas.1} parent=11 // pred_fallthru
          _
        // Predicated region
        $region21: #{conformer_block_pallas.1} parent=11 // pred_check
          %p347 = pneg %p111
        $region22: #{conformer_block_pallas.1} parent=11 // pred_check_branch
          %349 = sbr.rel (%p347) target = $region24
        $region23: #{conformer_block_pallas.1} parent=11 // pred_region
          _
        $region24: #{conformer_block_pallas.1} parent=11 // pred_fallthru
          _
        // Predicated region
        $region25: #{conformer_block_pallas.1} parent=11 // pred_check
          %p350 = pneg %p132
        $region26: #{conformer_block_pallas.1} parent=11 // pred_check_branch
          %352 = sbr.rel (%p350) target = $region28
        $region27: #{conformer_block_pallas.1} parent=11 // pred_region
          _
        $region28: #{conformer_block_pallas.1} parent=11 // pred_fallthru
          _
        // Predicated region
        $region29: #{conformer_block_pallas.1} parent=11 // pred_check
          %p353 = pneg %p153
        $region30: #{conformer_block_pallas.1} parent=11 // pred_check_branch
          %355 = sbr.rel (%p353) target = $region32
        $region31: #{conformer_block_pallas.1} parent=11 // pred_region
          _
        $region32: #{conformer_block_pallas.1} parent=11 // pred_fallthru
          _
        // Predicated region
        $region33: #{conformer_block_pallas.1} parent=11 // pred_check
          %p356 = pneg %p174
        $region34: #{conformer_block_pallas.1} parent=11 // pred_check_branch
          %358 = sbr.rel (%p356) target = $region36
        $region35: #{conformer_block_pallas.1} parent=11 // pred_region
          _
        $region36: #{conformer_block_pallas.1} parent=11 // pred_fallthru
          _
        // Predicated region
        $region37: #{conformer_block_pallas.1} parent=11 // pred_check
          %p359 = pneg %p195
        $region38: #{conformer_block_pallas.1} parent=11 // pred_check_branch
          %361 = sbr.rel (%p359) target = $region40
        $region39: #{conformer_block_pallas.1} parent=11 // pred_region
          _
        $region40: #{conformer_block_pallas.1} parent=11 // pred_fallthru
          _
        // Predicated region
        $region41: #{conformer_block_pallas.1} parent=11 // pred_check
          %p362 = pneg %p216
        $region42: #{conformer_block_pallas.1} parent=11 // pred_check_branch
          %364 = sbr.rel (%p362) target = $region44
        $region43: #{conformer_block_pallas.1} parent=11 // pred_region
          _
        $region44: #{conformer_block_pallas.1} parent=11 // pred_fallthru
          _
        // Predicated region
        $region45: #{conformer_block_pallas.1} parent=11 // pred_check
          %p365 = pneg %p237
        $region46: #{conformer_block_pallas.1} parent=11 // pred_check_branch
          %367 = sbr.rel (%p365) target = $region48
        $region47: #{conformer_block_pallas.1} parent=11 // pred_region
          _
        $region48: #{conformer_block_pallas.1} parent=11 // pred_fallthru
          _
        // Predicated region
        $region49: #{conformer_block_pallas.1} parent=11 // pred_check
          %p368 = pneg %p258
        $region50: #{conformer_block_pallas.1} parent=11 // pred_check_branch
          %370 = sbr.rel (%p368) target = $region52
        $region51: #{conformer_block_pallas.1} parent=11 // pred_region
          _
        $region52: #{conformer_block_pallas.1} parent=11 // pred_fallthru
          _
        // Predicated region
        $region53: #{conformer_block_pallas.1} parent=11 // pred_check
          %p371 = pneg %p279
        $region54: #{conformer_block_pallas.1} parent=11 // pred_check_branch
          %373 = sbr.rel (%p371) target = $region56
        $region55: #{conformer_block_pallas.1} parent=11 // pred_region
          _
        $region56: #{conformer_block_pallas.1} parent=11 // pred_fallthru
          _
        // Predicated region
        $region57: #{conformer_block_pallas.1} parent=11 // pred_check
          %p374 = pneg %p300
        $region58: #{conformer_block_pallas.1} parent=11 // pred_check_branch
          %376 = sbr.rel (%p374) target = $region60
        $region59: #{conformer_block_pallas.1} parent=11 // pred_region
          _
        $region60: #{conformer_block_pallas.1} parent=11 // pred_fallthru
          _
      $region12: #{conformer_block_pallas.1} parent=5 // pred_fallthru
        _
      %p377 = scmp.lt.s32.totalorder %s22, 2
      // Predicated region
      $region61: #{conformer_block_pallas.1} parent=5 // pred_check
        %p378 = pneg %p377
      $region62: #{conformer_block_pallas.1} parent=5 // pred_check_branch
        %380 = sbr.rel (%p378) target = $region64
      $region63: #{conformer_block_pallas.1} parent=5 // pred_region
        // Predicated region
        $region65: #{conformer_block_pallas.1} parent=63 // pred_check
          %p381 = pneg %p42
        $region66: #{conformer_block_pallas.1} parent=63 // pred_check_branch
          %383 = sbr.rel (%p381) target = $region68
        $region67: #{conformer_block_pallas.1} parent=63 // pred_region
          %p384 = scmp.lt.s32.totalorder %s22, 1
          %s385 = scalar_select %p384, %s22, 1
          %s386 = smul.addr %s385, 8
          %s387 = scalar_lea.vmem %s0, %s386
        $region68: #{conformer_block_pallas.1} parent=63 // pred_fallthru
          _
      $region64: #{conformer_block_pallas.1} parent=5 // pred_fallthru
        _
      %p388 = scmp.le.s32.totalorder 1, %s22
      %p389 = scmp.lt.s32.totalorder %s22, 3
      %p390 = pnand %p388, %p389
      %p391 = pneg %p390
      // Predicated region
      $region69: #{conformer_block_pallas.1} parent=5 // pred_check
        _
      $region70: #{conformer_block_pallas.1} parent=5 // pred_check_branch
        %393 = sbr.rel (%p390) target = $region72
      $region71: #{conformer_block_pallas.1} parent=5 // pred_region
        %s394 = ssub.s32 %s22, 1
        %p395 = scmp.lt.s32.totalorder %s27, 1
        %s396 = scalar_select %p395, %s27, 1
        %s397 = smul.addr %s396, 8
        %s398 = scalar_lea.vmem %s0, %s397
        %p399 = pneg %p48
        %p400 = pneg %p45
        %p401 = pneg %p69
        %p402 = pneg %p66
        %p403 = pneg %p90
        %p404 = pneg %p87
        %p405 = pneg %p111
        %p406 = pneg %p108
        %p407 = pneg %p132
        %p408 = pneg %p129
        %p409 = pneg %p153
        %p410 = pneg %p150
        %p411 = pneg %p174
        %p412 = pneg %p171
        %p413 = pneg %p195
        %p414 = pneg %p192
        %p415 = pneg %p216
        %p416 = pneg %p213
        %p417 = pneg %p237
        %p418 = pneg %p234
        %p419 = pneg %p258
        %p420 = pneg %p255
        %p421 = pneg %p279
        %p422 = pneg %p276
        %p423 = pneg %p300
        %p424 = pneg %p297
        %p425 = pneg %p326
        %p426 = pneg %p323
        %s427 = sand.u32 %s313, 1
        %s428 = scalar_lea.sflag [#allocation3], %s427
        %s429 = sand.u32 %s313, 1
        %s430 = smul.addr %s429, 8
        %s431 = scalar_lea.vmem [#allocation2], %s430
        %p432 = scmp.lt.s32.totalorder %s27, 1
        %s433 = scalar_select %p432, %s27, 1
        %s434 = smul.addr %s433, 8
        %s435 = scalar_lea.vmem %s0, %s434
        %v436 = vld [vmem:[%s435] sm:$0xff]
        %v437 = vld [vmem:[%s1] ss:$0 sm:$0xff]
        %v438 = vld [vmem:[%s1 + $0x1] ss:$0 sm:$0xff]
        %vm439 = vcmask 261120
        %v440 = vsel %vm439, %v436, 0.0
        %441 = vadd.xlane.f32.xlu0 %v440
        %v442 = vpop.xlane.xlu0 %441
        %v443 = vrcp.pop 32.0
        %v444 = vmul.f32 32.0, %v443
        %v445 = vsub.f32 1.0, %v444
        %v446 = vmul.f32 %v443, %v445
        %v447 = vadd.f32 %v443, %v446
        %vm448 = vweird.f32 %v443
        %v449 = vsel %vm448, %v443, %v447
        %v450 = vmul.f32 %v442, %v449
        %v451 = vsub.f32 %v436, %v450
        %v452 = vmul.f32 %v451, %v451
        %v453 = vsel %vm439, %v452, 0.0
        %454 = vadd.xlane.f32.xlu0 %v453
        %v455 = vpop.xlane.xlu0 %454
        %v456 = vmul.f32 %v455, %v449
        %v457 = vadd.f32 %v456, 1e-05
        %v458 = vrsqrt.pop %v457
        %v459 = vmul.f32 %v458, %v457
        %v460 = vmul.f32 %v459, %v458
        %v461 = vmul.f32 0.5, %v460
        %v462 = vsub.f32 1.5, %v461
        %v463 = vmul.f32 %v458, %v462
        %vm464 = vweird.f32 %v457
        %vm465 = vweird.f32 %v458
        %vm466 = vmor %vm464, %vm465
        %v467 = vsel %vm466, %v458, %v463
        %v468 = vmul.f32 %v451, %v467
        %v469 = vmul.f32 %v468, %v437
        %v470 = vadd.f32 %v469, %v438
        %v471 = vld [vmem:[%s2] sm:$0xff]
        %v472 = vld [vmem:[%s2 + $0x8] sm:$0xff]
        %v473 = vld [vmem:[%s2 + $0x10] sm:$0xff]
        %v474 = vld [vmem:[%s2 + $0x18] sm:$0xff]
        %v475 = vld [vmem:[%s2 + $0x20] sm:$0xff]
        %v476 = vld [vmem:[%s2 + $0x28] sm:$0xff]
        %v477 = vld [vmem:[%s2 + $0x30] sm:$0xff]
        %v478 = vld [vmem:[%s2 + $0x38] sm:$0xff]
        %s479 = scalar_lea.vmem %s1, 2
        %v480 = vld [vmem:[%s479] ss:$8 sm:$0x3]
        %v482 = vperm.slane %v480, 0
        %v483 = vperm.slane %v480, 1
        %v487 = vsel %vm439, %v470, 0
        %489 = vmatpush.msra.mxu0 0.0
        %490 = vmatpush.msra.mxu0 0.0
        %491 = vmatpush.msra.mxu0 0.0
        %492 = vmatpush.msra.mxu0 0.0
        %493 = vmatpush.msra.mxu0 0.0
        %494 = vmatpush.msra.mxu0 0.0
        %495 = vmatpush.msra.mxu0 0.0
        %496 = vmatpush.msra.mxu0 0.0
        %497 = vmatpush.msra.mxu0 0.0
        %498 = vmatpush.msra.mxu0 0.0
        %499 = vmatpush.msra.mxu0 0.0
        %500 = vmatpush.msra.mxu0 0.0
        %501 = vmatpush.msra.mxu0 %v477
        %502 = vmatpush.msra.mxu0 %v475
        %503 = vmatpush.msra.mxu0 %v473
        %504 = vmatpush.msra.mxu0 %v471
        %505 = vmatmul.f32.gmra.mxu0 %v487
        %v506 = vpop.f32.mrf.mxu0
        %v507 = vadd.f32 %v482, %v506
        %508 = vdwg.mxu0
        %509 = vmatpush.msra.mxu0 0.0
        %510 = vmatpush.msra.mxu0 0.0
        %511 = vmatpush.msra.mxu0 0.0
        %512 = vmatpush.msra.mxu0 0.0
        %513 = vmatpush.msra.mxu0 0.0
        %514 = vmatpush.msra.mxu0 0.0
        %515 = vmatpush.msra.mxu0 0.0
        %516 = vmatpush.msra.mxu0 0.0
        %517 = vmatpush.msra.mxu0 0.0
        %518 = vmatpush.msra.mxu0 0.0
        %519 = vmatpush.msra.mxu0 0.0
        %520 = vmatpush.msra.mxu0 0.0
        %521 = vmatpush.msra.mxu0 %v478
        %522 = vmatpush.msra.mxu0 %v476
        %523 = vmatpush.msra.mxu0 %v474
        %524 = vmatpush.msra.mxu0 %v472
        %525 = vmatmul.f32.gmra.mxu0 %v487
        %v526 = vpop.f32.mrf.mxu0
        %v527 = vadd.f32 %v483, %v526
        %528 = vdwg.mxu0
        %v529 = vxor.u32 %v527, 2147483648
        %v530 = vmul.f32 %v529, 1.442695
        %v531 = vpow.pop %v530
        %v532 = vadd.f32 %v531, 1.0
        %v533 = vrcp.pop %v532
        %v534 = vmul.f32 %v532, %v533
        %v535 = vsub.f32 1.0, %v534
        %v536 = vmul.f32 %v533, %v535
        %v537 = vadd.f32 %v533, %v536
        %vm538 = vweird.f32 %v532
        %vm539 = vweird.f32 %v533
        %vm540 = vmor %vm538, %vm539
        %v541 = vsel %vm540, %v533, %v537
        %v542 = vand.u32 2147483647, %v532
        %vm543 = vcmp.eq.f32.partialorder %v542, 8.507059e+37
        %v544 = vand.u32 %v532, 2147483648
        %v545 = vor.u32 1.1754944e-38, %v544
        %v546 = vsel %vm543, %v545, %v541
        %v547 = vmul.f32 1.0, %v546
        %v548 = vmul.f32 %v507, %v547
        %v549 = vld [vmem:[%s3] sm:$0xff]
        %v550 = vld [vmem:[%s3 + $0x8] sm:$0xff]
        %v551 = vld [vmem:[%s3 + $0x10] sm:$0xff]
        %v552 = vld [vmem:[%s3 + $0x18] sm:$0xff]
        %v553 = vld [vmem:[%s3 + $0x20] sm:$0xff]
        %v554 = vld [vmem:[%s3 + $0x28] sm:$0xff]
        %v555 = vld [vmem:[%s3 + $0x30] sm:$0xff]
        %v556 = vld [vmem:[%s3 + $0x38] sm:$0xff]
        %v557 = vld [vmem:[%s3 + $0x40] sm:$0xff]
        %v558 = vld [vmem:[%s3 + $0x48] sm:$0xff]
        %v559 = vld [vmem:[%s3 + $0x50] sm:$0xff]
        %v560 = vld [vmem:[%s3 + $0x58] sm:$0xff]
        %v561 = vld [vmem:[%s3 + $0x60] sm:$0xff]
        %v562 = vld [vmem:[%s3 + $0x68] sm:$0xff]
        %v563 = vld [vmem:[%s3 + $0x70] sm:$0xff]
        %v564 = vld [vmem:[%s3 + $0x78] sm:$0xff]
        %v565 = vld [vmem:[%s1 + $0x3] ss:$0 sm:$0xff]
        %566 = vmatpush.msra.mxu0 %v564
        %567 = vmatpush.msra.mxu0 %v563
        %568 = vmatpush.msra.mxu0 %v562
        %569 = vmatpush.msra.mxu0 %v561
        %570 = vmatpush.msra.mxu0 %v560
        %571 = vmatpush.msra.mxu0 %v559
        %572 = vmatpush.msra.mxu0 %v558
        %573 = vmatpush.msra.mxu0 %v557
        %574 = vmatpush.msra.mxu0 %v556
        %575 = vmatpush.msra.mxu0 %v555
        %576 = vmatpush.msra.mxu0 %v554
        %577 = vmatpush.msra.mxu0 %v553
        %578 = vmatpush.msra.mxu0 %v552
        %579 = vmatpush.msra.mxu0 %v551
        %580 = vmatpush.msra.mxu0 %v550
        %581 = vmatpush.msra.mxu0 %v549
        %582 = vmatmul.f32.gmra.mxu0 %v548
        %v583 = vpop.f32.mrf.mxu0
        %v584 = vadd.f32 %v565, %v583
        %585 = vdwg.mxu0
        %v586 = vmul.f32 %v584, 0.5
        %v587 = vadd.f32 %v436, %v586
        %v588 = vld [vmem:[%s1 + $0x4] ss:$0 sm:$0xff]
        %v589 = vld [vmem:[%s1 + $0x5] ss:$0 sm:$0xff]
        %v590 = vsel %vm439, %v587, 0.0
        %591 = vadd.xlane.f32.xlu0 %v590
        %v592 = vpop.xlane.xlu0 %591
        %v593 = vmul.f32 %v592, %v449
        %v594 = vsub.f32 %v587, %v593
        %v595 = vmul.f32 %v594, %v594
        %v596 = vsel %vm439, %v595, 0.0
        %597 = vadd.xlane.f32.xlu0 %v596
        %v598 = vpop.xlane.xlu0 %597
        %v599 = vmul.f32 %v598, %v449
        %v600 = vadd.f32 %v599, 1e-05
        %v601 = vrsqrt.pop %v600
        %v602 = vmul.f32 %v601, %v600
        %v603 = vmul.f32 %v602, %v601
        %v604 = vmul.f32 0.5, %v603
        %v605 = vsub.f32 1.5, %v604
        %v606 = vmul.f32 %v601, %v605
        %vm607 = vweird.f32 %v600
        %vm608 = vweird.f32 %v601
        %vm609 = vmor %vm607, %vm608
        %v610 = vsel %vm609, %v601, %v606
        %v611 = vmul.f32 %v594, %v610
        %v612 = vmul.f32 %v611, %v588
        %v613 = vadd.f32 %v612, %v589
        %v614 = vld [vmem:[%s4] sm:$0xff]
        %v615 = vld [vmem:[%s4 + $0x8] sm:$0xff]
        %v616 = vld [vmem:[%s4 + $0x10] sm:$0xff]
        %v617 = vld [vmem:[%s4 + $0x18] sm:$0xff]
        %v619 = vsel %vm439, %v613, 0
        %621 = vmatpush.msra.mxu0 0.0
        %622 = vmatpush.msra.mxu0 0.0
        %623 = vmatpush.msra.mxu0 0.0
        %624 = vmatpush.msra.mxu0 0.0
        %625 = vmatpush.msra.mxu0 0.0
        %626 = vmatpush.msra.mxu0 0.0
        %627 = vmatpush.msra.mxu0 0.0
        %628 = vmatpush.msra.mxu0 0.0
        %629 = vmatpush.msra.mxu0 0.0
        %630 = vmatpush.msra.mxu0 0.0
        %631 = vmatpush.msra.mxu0 0.0
        %632 = vmatpush.msra.mxu0 0.0
        %633 = vmatpush.msra.mxu0 %v617
        %634 = vmatpush.msra.mxu0 %v616
        %635 = vmatpush.msra.mxu0 %v615
        %636 = vmatpush.msra.mxu0 %v614
        %637 = vmatmul.f32.gmra.mxu0 %v619
        %v638 = vpop.f32.mrf.mxu0
        %v639 = vadd.f32 0.0, %v638
        %640 = vdwg.mxu0
        %v641 = vld [vmem:[%s5] sm:$0xff]
        %v642 = vld [vmem:[%s5 + $0x8] sm:$0xff]
        %v643 = vld [vmem:[%s5 + $0x10] sm:$0xff]
        %v644 = vld [vmem:[%s5 + $0x18] sm:$0xff]
        %645 = vmatpush.msra.mxu0 0.0
        %646 = vmatpush.msra.mxu0 0.0
        %647 = vmatpush.msra.mxu0 0.0
        %648 = vmatpush.msra.mxu0 0.0
        %649 = vmatpush.msra.mxu0 0.0
        %650 = vmatpush.msra.mxu0 0.0
        %651 = vmatpush.msra.mxu0 0.0
        %652 = vmatpush.msra.mxu0 0.0
        %653 = vmatpush.msra.mxu0 0.0
        %654 = vmatpush.msra.mxu0 0.0
        %655 = vmatpush.msra.mxu0 0.0
        %656 = vmatpush.msra.mxu0 0.0
        %657 = vmatpush.msra.mxu0 %v644
        %658 = vmatpush.msra.mxu0 %v643
        %659 = vmatpush.msra.mxu0 %v642
        %660 = vmatpush.msra.mxu0 %v641
        %661 = vmatmul.f32.gmra.mxu0 %v619
        %v662 = vpop.f32.mrf.mxu0
        %v663 = vadd.f32 0.0, %v662
        %664 = vdwg.mxu0
        %v665 = vld [vmem:[%s6] sm:$0xff]
        %v666 = vld [vmem:[%s6 + $0x8] sm:$0xff]
        %v667 = vld [vmem:[%s6 + $0x10] sm:$0xff]
        %v668 = vld [vmem:[%s6 + $0x18] sm:$0xff]
        %669 = vmatpush.msra.mxu0 0.0
        %670 = vmatpush.msra.mxu0 0.0
        %671 = vmatpush.msra.mxu0 0.0
        %672 = vmatpush.msra.mxu0 0.0
        %673 = vmatpush.msra.mxu0 0.0
        %674 = vmatpush.msra.mxu0 0.0
        %675 = vmatpush.msra.mxu0 0.0
        %676 = vmatpush.msra.mxu0 0.0
        %677 = vmatpush.msra.mxu0 0.0
        %678 = vmatpush.msra.mxu0 0.0
        %679 = vmatpush.msra.mxu0 0.0
        %680 = vmatpush.msra.mxu0 0.0
        %681 = vmatpush.msra.mxu0 %v668
        %682 = vmatpush.msra.mxu0 %v667
        %683 = vmatpush.msra.mxu0 %v666
        %684 = vmatpush.msra.mxu0 %v665
        %685 = vmatmul.f32.gmra.mxu0 %v619
        %v686 = vpop.f32.mrf.mxu0
        %v687 = vadd.f32 0.0, %v686
        %688 = vdwg.mxu0
        %690 = vrot.lane.b32.xlu0 %v639, 120
        %v691 = vpop.permute.xlu0 %690
        %692 = vrot.lane.b32.xlu0 %v639, 112
        %v693 = vpop.permute.xlu0 %692
        %694 = vrot.lane.b32.xlu0 %v639, 104
        %v695 = vpop.permute.xlu0 %694
        %697 = vrot.lane.b32.xlu0 %v663, 120
        %v698 = vpop.permute.xlu0 %697
        %699 = vrot.lane.b32.xlu0 %v663, 112
        %v700 = vpop.permute.xlu0 %699
        %701 = vrot.lane.b32.xlu0 %v663, 104
        %v702 = vpop.permute.xlu0 %701
        %704 = vrot.lane.b32.xlu0 %v687, 120
        %v705 = vpop.permute.xlu0 %704
        %707 = vrot.lane.b32.xlu0 %v687, 112
        %v708 = vpop.permute.xlu0 %707
        %710 = vrot.lane.b32.xlu0 %v687, 104
        %v711 = vpop.permute.xlu0 %710
        %vm713 = vcmask 64512
        %v714 = vsel %vm713, %v639, 0
        %v716 = vsel %vm713, %v663, 0
        %718 = vmatpush.xpose.msra.mxu0 0.0
        %719 = vmatpush.xpose.msra.mxu0 0.0
        %720 = vmatpush.xpose.msra.mxu0 0.0
        %721 = vmatpush.xpose.msra.mxu0 0.0
        %722 = vmatpush.xpose.msra.mxu0 0.0
        %723 = vmatpush.xpose.msra.mxu0 0.0
        %724 = vmatpush.xpose.msra.mxu0 0.0
        %725 = vmatpush.xpose.msra.mxu0 0.0
        %726 = vmatpush.xpose.msra.mxu0 0.0
        %727 = vmatpush.xpose.msra.mxu0 0.0
        %728 = vmatpush.xpose.msra.mxu0 0.0
        %729 = vmatpush.xpose.msra.mxu0 0.0
        %730 = vmatpush.xpose.msra.mxu0 0.0
        %731 = vmatpush.xpose.msra.mxu0 0.0
        %732 = vmatpush.xpose.msra.mxu0 0.0
        %733 = vmatpush.xpose.msra.mxu0 %v716
        %734 = vmatmul.f32.gmra.mxu0 %v714
        %v735 = vpop.f32.mrf.mxu0
        %v736 = vadd.f32 0.0, %v735
        %737 = vdwg.mxu0
        %v738 = vsel %vm713, %v691, 0
        %v740 = vsel %vm713, %v698, 0
        %742 = vmatpush.xpose.msra.mxu0 0.0
        %743 = vmatpush.xpose.msra.mxu0 0.0
        %744 = vmatpush.xpose.msra.mxu0 0.0
        %745 = vmatpush.xpose.msra.mxu0 0.0
        %746 = vmatpush.xpose.msra.mxu0 0.0
        %747 = vmatpush.xpose.msra.mxu0 0.0
        %748 = vmatpush.xpose.msra.mxu0 0.0
        %749 = vmatpush.xpose.msra.mxu0 0.0
        %750 = vmatpush.xpose.msra.mxu0 0.0
        %751 = vmatpush.xpose.msra.mxu0 0.0
        %752 = vmatpush.xpose.msra.mxu0 0.0
        %753 = vmatpush.xpose.msra.mxu0 0.0
        %754 = vmatpush.xpose.msra.mxu0 0.0
        %755 = vmatpush.xpose.msra.mxu0 0.0
        %756 = vmatpush.xpose.msra.mxu0 0.0
        %757 = vmatpush.xpose.msra.mxu0 %v740
        %758 = vmatmul.f32.gmra.mxu0 %v738
        %v759 = vpop.f32.mrf.mxu0
        %v760 = vadd.f32 0.0, %v759
        %761 = vdwg.mxu0
        %v762 = vsel %vm713, %v693, 0
        %v764 = vsel %vm713, %v700, 0
        %766 = vmatpush.xpose.msra.mxu0 0.0
        %767 = vmatpush.xpose.msra.mxu0 0.0
        %768 = vmatpush.xpose.msra.mxu0 0.0
        %769 = vmatpush.xpose.msra.mxu0 0.0
        %770 = vmatpush.xpose.msra.mxu0 0.0
        %771 = vmatpush.xpose.msra.mxu0 0.0
        %772 = vmatpush.xpose.msra.mxu0 0.0
        %773 = vmatpush.xpose.msra.mxu0 0.0
        %774 = vmatpush.xpose.msra.mxu0 0.0
        %775 = vmatpush.xpose.msra.mxu0 0.0
        %776 = vmatpush.xpose.msra.mxu0 0.0
        %777 = vmatpush.xpose.msra.mxu0 0.0
        %778 = vmatpush.xpose.msra.mxu0 0.0
        %779 = vmatpush.xpose.msra.mxu0 0.0
        %780 = vmatpush.xpose.msra.mxu0 0.0
        %781 = vmatpush.xpose.msra.mxu0 %v764
        %782 = vmatmul.f32.gmra.mxu0 %v762
        %v783 = vpop.f32.mrf.mxu0
        %v784 = vadd.f32 0.0, %v783
        %785 = vdwg.mxu0
        %v786 = vsel %vm713, %v695, 0
        %v788 = vsel %vm713, %v702, 0
        %790 = vmatpush.xpose.msra.mxu0 0.0
        %791 = vmatpush.xpose.msra.mxu0 0.0
        %792 = vmatpush.xpose.msra.mxu0 0.0
        %793 = vmatpush.xpose.msra.mxu0 0.0
        %794 = vmatpush.xpose.msra.mxu0 0.0
        %795 = vmatpush.xpose.msra.mxu0 0.0
        %796 = vmatpush.xpose.msra.mxu0 0.0
        %797 = vmatpush.xpose.msra.mxu0 0.0
        %798 = vmatpush.xpose.msra.mxu0 0.0
        %799 = vmatpush.xpose.msra.mxu0 0.0
        %800 = vmatpush.xpose.msra.mxu0 0.0
        %801 = vmatpush.xpose.msra.mxu0 0.0
        %802 = vmatpush.xpose.msra.mxu0 0.0
        %803 = vmatpush.xpose.msra.mxu0 0.0
        %804 = vmatpush.xpose.msra.mxu0 0.0
        %805 = vmatpush.xpose.msra.mxu0 %v788
        %806 = vmatmul.f32.gmra.mxu0 %v786
        %v807 = vpop.f32.mrf.mxu0
        %v808 = vadd.f32 0.0, %v807
        %809 = vdwg.mxu0
        %v810 = vmul.f32 %v736, 0.35355338
        %v811 = vmul.f32 %v760, 0.35355338
        %v812 = vmul.f32 %v784, 0.35355338
        %v813 = vmul.f32 %v808, 0.35355338
        %v814 = vsel %vm713, %v810, -inf
        %815 = vmax.xlane.f32.xlu0 %v814
        %v816 = vpop.xlane.xlu0 %815
        %v817 = vsel %vm713, %v811, -inf
        %818 = vmax.xlane.f32.xlu0 %v817
        %v819 = vpop.xlane.xlu0 %818
        %v820 = vsel %vm713, %v812, -inf
        %821 = vmax.xlane.f32.xlu0 %v820
        %v822 = vpop.xlane.xlu0 %821
        %v823 = vsel %vm713, %v813, -inf
        %824 = vmax.xlane.f32.xlu0 %v823
        %v825 = vpop.xlane.xlu0 %824
        %v826 = vsub.f32 %v810, %v816
        %v827 = vsub.f32 %v811, %v819
        %v828 = vsub.f32 %v812, %v822
        %v829 = vsub.f32 %v813, %v825
        %v830 = vmul.f32 %v826, 1.442695
        %v831 = vpow.pop %v830
        %v832 = vmul.f32 %v827, 1.442695
        %v833 = vpow.pop %v832
        %v834 = vmul.f32 %v828, 1.442695
        %v835 = vpow.pop %v834
        %v836 = vmul.f32 %v829, 1.442695
        %v837 = vpow.pop %v836
        %v838 = vsel %vm713, %v831, 0.0
        %839 = vadd.xlane.f32.xlu0 %v838
        %v840 = vpop.xlane.xlu0 %839
        %v841 = vsel %vm713, %v833, 0.0
        %842 = vadd.xlane.f32.xlu0 %v841
        %v843 = vpop.xlane.xlu0 %842
        %v844 = vsel %vm713, %v835, 0.0
        %845 = vadd.xlane.f32.xlu0 %v844
        %v846 = vpop.xlane.xlu0 %845
        %v847 = vsel %vm713, %v837, 0.0
        %848 = vadd.xlane.f32.xlu0 %v847
        %v849 = vpop.xlane.xlu0 %848
        %v850 = vrcp.pop %v840
        %v851 = vrcp.pop %v843
        %v852 = vrcp.pop %v846
        %v853 = vrcp.pop %v849
        %v854 = vmul.f32 %v831, %v850
        %v855 = vmul.f32 %v833, %v851
        %v856 = vmul.f32 %v835, %v852
        %v857 = vmul.f32 %v837, %v853
        %v859 = vsel %vm713, %v854, 0
        %861 = vmatpush.msra.mxu0 0.0
        %862 = vmatpush.msra.mxu0 0.0
        %863 = vmatpush.msra.mxu0 0.0
        %864 = vmatpush.msra.mxu0 0.0
        %865 = vmatpush.msra.mxu0 0.0
        %866 = vmatpush.msra.mxu0 0.0
        %867 = vmatpush.msra.mxu0 0.0
        %868 = vmatpush.msra.mxu0 0.0
        %869 = vmatpush.msra.mxu0 0.0
        %870 = vmatpush.msra.mxu0 0.0
        %871 = vmatpush.msra.mxu0 0.0
        %872 = vmatpush.msra.mxu0 0.0
        %873 = vmatpush.msra.mxu0 0.0
        %874 = vmatpush.msra.mxu0 0.0
        %875 = vmatpush.msra.mxu0 0.0
        %876 = vmatpush.msra.mxu0 %v687
        %877 = vmatmul.f32.gmra.mxu0 %v859
        %v878 = vpop.f32.mrf.mxu0
        %v879 = vadd.f32 0.0, %v878
        %880 = vdwg.mxu0
        %v882 = vsel %vm713, %v855, 0
        %884 = vmatpush.msra.mxu0 0.0
        %885 = vmatpush.msra.mxu0 0.0
        %886 = vmatpush.msra.mxu0 0.0
        %887 = vmatpush.msra.mxu0 0.0
        %888 = vmatpush.msra.mxu0 0.0
        %889 = vmatpush.msra.mxu0 0.0
        %890 = vmatpush.msra.mxu0 0.0
        %891 = vmatpush.msra.mxu0 0.0
        %892 = vmatpush.msra.mxu0 0.0
        %893 = vmatpush.msra.mxu0 0.0
        %894 = vmatpush.msra.mxu0 0.0
        %895 = vmatpush.msra.mxu0 0.0
        %896 = vmatpush.msra.mxu0 0.0
        %897 = vmatpush.msra.mxu0 0.0
        %898 = vmatpush.msra.mxu0 0.0
        %899 = vmatpush.msra.mxu0 %v705
        %900 = vmatmul.f32.gmra.mxu0 %v882
        %v901 = vpop.f32.mrf.mxu0
        %v902 = vadd.f32 0.0, %v901
        %903 = vdwg.mxu0
        %v905 = vsel %vm713, %v856, 0
        %907 = vmatpush.msra.mxu0 0.0
        %908 = vmatpush.msra.mxu0 0.0
        %909 = vmatpush.msra.mxu0 0.0
        %910 = vmatpush.msra.mxu0 0.0
        %911 = vmatpush.msra.mxu0 0.0
        %912 = vmatpush.msra.mxu0 0.0
        %913 = vmatpush.msra.mxu0 0.0
        %914 = vmatpush.msra.mxu0 0.0
        %915 = vmatpush.msra.mxu0 0.0
        %916 = vmatpush.msra.mxu0 0.0
        %917 = vmatpush.msra.mxu0 0.0
        %918 = vmatpush.msra.mxu0 0.0
        %919 = vmatpush.msra.mxu0 0.0
        %920 = vmatpush.msra.mxu0 0.0
        %921 = vmatpush.msra.mxu0 0.0
        %922 = vmatpush.msra.mxu0 %v708
        %923 = vmatmul.f32.gmra.mxu0 %v905
        %v924 = vpop.f32.mrf.mxu0
        %v925 = vadd.f32 0.0, %v924
        %926 = vdwg.mxu0
        %v928 = vsel %vm713, %v857, 0
        %930 = vmatpush.msra.mxu0 0.0
        %931 = vmatpush.msra.mxu0 0.0
        %932 = vmatpush.msra.mxu0 0.0
        %933 = vmatpush.msra.mxu0 0.0
        %934 = vmatpush.msra.mxu0 0.0
        %935 = vmatpush.msra.mxu0 0.0
        %936 = vmatpush.msra.mxu0 0.0
        %937 = vmatpush.msra.mxu0 0.0
        %938 = vmatpush.msra.mxu0 0.0
        %939 = vmatpush.msra.mxu0 0.0
        %940 = vmatpush.msra.mxu0 0.0
        %941 = vmatpush.msra.mxu0 0.0
        %942 = vmatpush.msra.mxu0 0.0
        %943 = vmatpush.msra.mxu0 0.0
        %944 = vmatpush.msra.mxu0 0.0
        %945 = vmatpush.msra.mxu0 %v711
        %946 = vmatmul.f32.gmra.mxu0 %v928
        %v947 = vpop.f32.mrf.mxu0
        %v948 = vadd.f32 0.0, %v947
        %949 = vdwg.mxu0
        %v950 = vld [vmem:[%s7] sm:$0xff]
        %v951 = vld [vmem:[%s7 + $0x8] sm:$0xff]
        %v952 = vld [vmem:[%s7 + $0x10] sm:$0xff]
        %v953 = vld [vmem:[%s7 + $0x18] sm:$0xff]
        %v955 = vsel %vm713, %v902, 0
        %957 = vmatpush.msra.mxu0 0.0
        %958 = vmatpush.msra.mxu0 0.0
        %959 = vmatpush.msra.mxu0 0.0
        %960 = vmatpush.msra.mxu0 0.0
        %961 = vmatpush.msra.mxu0 0.0
        %962 = vmatpush.msra.mxu0 0.0
        %963 = vmatpush.msra.mxu0 0.0
        %964 = vmatpush.msra.mxu0 0.0
        %965 = vmatpush.msra.mxu0 0.0
        %966 = vmatpush.msra.mxu0 0.0
        %967 = vmatpush.msra.mxu0 0.0
        %968 = vmatpush.msra.mxu0 0.0
        %969 = vmatpush.msra.mxu0 0.0
        %970 = vmatpush.msra.mxu0 0.0
        %971 = vmatpush.msra.mxu0 0.0
        %972 = vmatpush.msra.mxu0 %v951
        %973 = vmatmul.f32.gmra.mxu0 %v955
        %v974 = vpop.f32.mrf.mxu0
        %v975 = vadd.f32 0.0, %v974
        %976 = vdwg.mxu0
        %v978 = vsel %vm713, %v879, 0
        %980 = vmatpush.msra.mxu0 0.0
        %981 = vmatpush.msra.mxu0 0.0
        %982 = vmatpush.msra.mxu0 0.0
        %983 = vmatpush.msra.mxu0 0.0
        %984 = vmatpush.msra.mxu0 0.0
        %985 = vmatpush.msra.mxu0 0.0
        %986 = vmatpush.msra.mxu0 0.0
        %987 = vmatpush.msra.mxu0 0.0
        %988 = vmatpush.msra.mxu0 0.0
        %989 = vmatpush.msra.mxu0 0.0
        %990 = vmatpush.msra.mxu0 0.0
        %991 = vmatpush.msra.mxu0 0.0
        %992 = vmatpush.msra.mxu0 0.0
        %993 = vmatpush.msra.mxu0 0.0
        %994 = vmatpush.msra.mxu0 0.0
        %995 = vmatpush.msra.mxu0 %v950
        %996 = vmatmul.f32.gmra.mxu0 %v978
        %v997 = vpop.f32.mrf.mxu0
        %v998 = vadd.f32 %v975, %v997
        %999 = vdwg.mxu0
        %v1001 = vsel %vm713, %v925, 0
        %1003 = vmatpush.msra.mxu0 0.0
        %1004 = vmatpush.msra.mxu0 0.0
        %1005 = vmatpush.msra.mxu0 0.0
        %1006 = vmatpush.msra.mxu0 0.0
        %1007 = vmatpush.msra.mxu0 0.0
        %1008 = vmatpush.msra.mxu0 0.0
        %1009 = vmatpush.msra.mxu0 0.0
        %1010 = vmatpush.msra.mxu0 0.0
        %1011 = vmatpush.msra.mxu0 0.0
        %1012 = vmatpush.msra.mxu0 0.0
        %1013 = vmatpush.msra.mxu0 0.0
        %1014 = vmatpush.msra.mxu0 0.0
        %1015 = vmatpush.msra.mxu0 0.0
        %1016 = vmatpush.msra.mxu0 0.0
        %1017 = vmatpush.msra.mxu0 0.0
        %1018 = vmatpush.msra.mxu0 %v952
        %1019 = vmatmul.f32.gmra.mxu0 %v1001
        %v1020 = vpop.f32.mrf.mxu0
        %v1021 = vadd.f32 0.0, %v1020
        %1022 = vdwg.mxu0
        %v1023 = vadd.f32 %v998, %v1021
        %v1025 = vsel %vm713, %v948, 0
        %1027 = vmatpush.msra.mxu0 0.0
        %1028 = vmatpush.msra.mxu0 0.0
        %1029 = vmatpush.msra.mxu0 0.0
        %1030 = vmatpush.msra.mxu0 0.0
        %1031 = vmatpush.msra.mxu0 0.0
        %1032 = vmatpush.msra.mxu0 0.0
        %1033 = vmatpush.msra.mxu0 0.0
        %1034 = vmatpush.msra.mxu0 0.0
        %1035 = vmatpush.msra.mxu0 0.0
        %1036 = vmatpush.msra.mxu0 0.0
        %1037 = vmatpush.msra.mxu0 0.0
        %1038 = vmatpush.msra.mxu0 0.0
        %1039 = vmatpush.msra.mxu0 0.0
        %1040 = vmatpush.msra.mxu0 0.0
        %1041 = vmatpush.msra.mxu0 0.0
        %1042 = vmatpush.msra.mxu0 %v953
        %1043 = vmatmul.f32.gmra.mxu0 %v1025
        %v1044 = vpop.f32.mrf.mxu0
        %v1045 = vadd.f32 0.0, %v1044
        %1046 = vdwg.mxu0
        %v1047 = vadd.f32 %v1023, %v1045
        %v1048 = vadd.f32 %v587, %v1047
        %v1049 = vld [vmem:[%s1 + $0x6] ss:$0 sm:$0xff]
        %v1050 = vadd.f32 %v1048, %v1049
        %v1051 = vld [vmem:[%s1 + $0x7] ss:$0 sm:$0xff]
        %v1052 = vld [vmem:[%s1 + $0x10] ss:$0 sm:$0xff]
        %v1053 = vsel %vm439, %v1050, 0.0
        %1054 = vadd.xlane.f32.xlu0 %v1053
        %v1055 = vpop.xlane.xlu0 %1054
        %v1056 = vmul.f32 %v1055, %v449
        %v1057 = vsub.f32 %v1050, %v1056
        %v1058 = vmul.f32 %v1057, %v1057
        %v1059 = vsel %vm439, %v1058, 0.0
        %1060 = vadd.xlane.f32.xlu0 %v1059
        %v1061 = vpop.xlane.xlu0 %1060
        %v1062 = vmul.f32 %v1061, %v449
        %v1063 = vadd.f32 %v1062, 1e-05
        %v1064 = vrsqrt.pop %v1063
        %v1065 = vmul.f32 %v1064, %v1063
        %v1066 = vmul.f32 %v1065, %v1064
        %v1067 = vmul.f32 0.5, %v1066
        %v1068 = vsub.f32 1.5, %v1067
        %v1069 = vmul.f32 %v1064, %v1068
        %vm1070 = vweird.f32 %v1063
        %vm1071 = vweird.f32 %v1064
        %vm1072 = vmor %vm1070, %vm1071
        %v1073 = vsel %vm1072, %v1064, %v1069
        %v1074 = vmul.f32 %v1057, %v1073
        %v1075 = vmul.f32 %v1074, %v1051
        %v1076 = vadd.f32 %v1075, %v1052
        %v1077 = vld [vmem:[%s8] sm:$0xff]
        %v1078 = vld [vmem:[%s8 + $0x8] sm:$0xff]
        %v1079 = vld [vmem:[%s8 + $0x10] sm:$0xff]
        %v1080 = vld [vmem:[%s8 + $0x18] sm:$0xff]
        %v1081 = vld [vmem:[%s1 + $0x11] ss:$0 sm:$0xff]
        %v1083 = vsel %vm439, %v1076, 0
        %1085 = vmatpush.msra.mxu0 0.0
        %1086 = vmatpush.msra.mxu0 0.0
        %1087 = vmatpush.msra.mxu0 0.0
        %1088 = vmatpush.msra.mxu0 0.0
        %1089 = vmatpush.msra.mxu0 0.0
        %1090 = vmatpush.msra.mxu0 0.0
        %1091 = vmatpush.msra.mxu0 0.0
        %1092 = vmatpush.msra.mxu0 0.0
        %1093 = vmatpush.msra.mxu0 0.0
        %1094 = vmatpush.msra.mxu0 0.0
        %1095 = vmatpush.msra.mxu0 0.0
        %1096 = vmatpush.msra.mxu0 0.0
        %1097 = vmatpush.msra.mxu0 %v1080
        %1098 = vmatpush.msra.mxu0 %v1079
        %1099 = vmatpush.msra.mxu0 %v1078
        %1100 = vmatpush.msra.mxu0 %v1077
        %1101 = vmatmul.f32.gmra.mxu0 %v1083
        %v1102 = vpop.f32.mrf.mxu0
        %v1103 = vadd.f32 %v1081, %v1102
        %1104 = vdwg.mxu0
        %v1105 = vld [vmem:[%s9] sm:$0xff]
        %v1106 = vld [vmem:[%s9 + $0x8] sm:$0xff]
        %v1107 = vld [vmem:[%s9 + $0x10] sm:$0xff]
        %v1108 = vld [vmem:[%s9 + $0x18] sm:$0xff]
        %v1109 = vld [vmem:[%s1 + $0x12] ss:$0 sm:$0xff]
        %1110 = vmatpush.msra.mxu0 0.0
        %1111 = vmatpush.msra.mxu0 0.0
        %1112 = vmatpush.msra.mxu0 0.0
        %1113 = vmatpush.msra.mxu0 0.0
        %1114 = vmatpush.msra.mxu0 0.0
        %1115 = vmatpush.msra.mxu0 0.0
        %1116 = vmatpush.msra.mxu0 0.0
        %1117 = vmatpush.msra.mxu0 0.0
        %1118 = vmatpush.msra.mxu0 0.0
        %1119 = vmatpush.msra.mxu0 0.0
        %1120 = vmatpush.msra.mxu0 0.0
        %1121 = vmatpush.msra.mxu0 0.0
        %1122 = vmatpush.msra.mxu0 %v1108
        %1123 = vmatpush.msra.mxu0 %v1107
        %1124 = vmatpush.msra.mxu0 %v1106
        %1125 = vmatpush.msra.mxu0 %v1105
        %1126 = vmatmul.f32.gmra.mxu0 %v1083
        %v1127 = vpop.f32.mrf.mxu0
        %v1128 = vadd.f32 %v1109, %v1127
        %1129 = vdwg.mxu0
        %v1130 = vxor.u32 %v1128, 2147483648
        %v1131 = vmul.f32 %v1130, 1.442695
        %v1132 = vpow.pop %v1131
        %v1133 = vadd.f32 %v1132, 1.0
        %v1134 = vrcp.pop %v1133
        %v1135 = vmul.f32 %v1133, %v1134
        %v1136 = vsub.f32 1.0, %v1135
        %v1137 = vmul.f32 %v1134, %v1136
        %v1138 = vadd.f32 %v1134, %v1137
        %vm1139 = vweird.f32 %v1133
        %vm1140 = vweird.f32 %v1134
        %vm1141 = vmor %vm1139, %vm1140
        %v1142 = vsel %vm1141, %v1134, %v1138
        %v1143 = vand.u32 2147483647, %v1133
        %vm1144 = vcmp.eq.f32.partialorder %v1143, 8.507059e+37
        %v1145 = vand.u32 %v1133, 2147483648
        %v1146 = vor.u32 1.1754944e-38, %v1145
        %v1147 = vsel %vm1144, %v1146, %v1142
        %v1148 = vmul.f32 1.0, %v1147
        %v1149 = vmul.f32 %v1103, %v1148
        %v1151 = vrot.slane %v1149, 5
        %vm1153 = vcmask 1042432
        %v1154 = vsel %vm1153, 0.0, %v1151
        %v1155 = vsel %vm1153, %v1151, 0.0
        %v1156 = vld [vmem:[%s1 + $0x10] sm:$0xf8]
        %v1157 = vld [vmem:[%s1 + $0x20] sm:$0x3]
        %v1158 = vperm.slane %v1156, 3
        %v1159 = vmul.f32 %v1154, %v1158
        %v1160 = vadd.f32 %v1159, 0.0
        %v1161 = vperm.slane %v1156, 4
        %v1162 = vmul.f32 %v1154, %v1161
        %v1163 = vmul.f32 %v1155, %v1161
        %vm1166 = vcmask 1046528
        %v1167 = vrot.slane %v1162, 1
        %v1168 = vrot.slane %v1163, 1
        %v1169 = vsel %vm1166, %v1167, %v1168
        %v1171 = vadd.f32 %v1160, %v1169
        %v1172 = vperm.slane %v1156, 5
        %v1173 = vmul.f32 %v1154, %v1172
        %v1174 = vmul.f32 %v1155, %v1172
        %vm1177 = vcmask 1045504
        %v1178 = vrot.slane %v1173, 2
        %v1179 = vrot.slane %v1174, 2
        %v1180 = vsel %vm1177, %v1178, %v1179
        %v1182 = vadd.f32 %v1171, %v1180
        %v1183 = vperm.slane %v1156, 6
        %v1184 = vmul.f32 %v1154, %v1183
        %v1185 = vmul.f32 %v1155, %v1183
        %vm1188 = vcmask 1044480
        %v1189 = vrot.slane %v1184, 3
        %v1190 = vrot.slane %v1185, 3
        %v1191 = vsel %vm1188, %v1189, %v1190
        %v1193 = vadd.f32 %v1182, %v1191
        %v1194 = vperm.slane %v1156, 7
        %v1195 = vmul.f32 %v1154, %v1194
        %v1196 = vmul.f32 %v1155, %v1194
        %vm1199 = vcmask 1043456
        %v1200 = vrot.slane %v1195, 4
        %v1201 = vrot.slane %v1196, 4
        %v1202 = vsel %vm1199, %v1200, %v1201
        %v1204 = vadd.f32 %v1193, %v1202
        %v1205 = vperm.slane %v1157, 0
        %v1206 = vmul.f32 %v1154, %v1205
        %v1207 = vmul.f32 %v1155, %v1205
        %v1210 = vrot.slane %v1206, 5
        %v1211 = vrot.slane %v1207, 5
        %v1212 = vsel %vm1153, %v1210, %v1211
        %v1214 = vadd.f32 %v1204, %v1212
        %v1215 = vperm.slane %v1157, 1
        %v1216 = vmul.f32 %v1154, %v1215
        %v1217 = vmul.f32 %v1155, %v1215
        %vm1220 = vcmask 1041408
        %v1221 = vrot.slane %v1216, 6
        %v1222 = vrot.slane %v1217, 6
        %v1223 = vsel %vm1220, %v1221, %v1222
        %v1225 = vadd.f32 %v1214, %v1223
        %v1226 = vld [vmem:[%s1 + $0x22] ss:$0 sm:$0xff]
        %v1227 = vadd.f32 %v1225, %v1226
        %v1228 = vld [vmem:[%s1 + $0x23] ss:$0 sm:$0xff]
        %v1229 = vmul.f32 %v1227, %v1228
        %v1230 = vld [vmem:[%s1 + $0x24] ss:$0 sm:$0xff]
        %v1231 = vadd.f32 %v1229, %v1230
        %v1232 = vxor.u32 %v1231, 2147483648
        %v1233 = vmul.f32 %v1232, 1.442695
        %v1234 = vpow.pop %v1233
        %v1235 = vadd.f32 %v1234, 1.0
        %v1236 = vrcp.pop %v1235
        %v1237 = vmul.f32 %v1235, %v1236
        %v1238 = vsub.f32 1.0, %v1237
        %v1239 = vmul.f32 %v1236, %v1238
        %v1240 = vadd.f32 %v1236, %v1239
        %vm1241 = vweird.f32 %v1235
        %vm1242 = vweird.f32 %v1236
        %vm1243 = vmor %vm1241, %vm1242
        %v1244 = vsel %vm1243, %v1236, %v1240
        %v1245 = vand.u32 2147483647, %v1235
        %vm1246 = vcmp.eq.f32.partialorder %v1245, 8.507059e+37
        %v1247 = vand.u32 %v1235, 2147483648
        %v1248 = vor.u32 1.1754944e-38, %v1247
        %v1249 = vsel %vm1246, %v1248, %v1244
        %v1250 = vmul.f32 1.0, %v1249
        %v1251 = vmul.f32 %v1231, %v1250
        %v1252 = vld [vmem:[%s10] sm:$0xff]
        %v1253 = vld [vmem:[%s10 + $0x8] sm:$0xff]
        %v1254 = vld [vmem:[%s10 + $0x10] sm:$0xff]
        %v1255 = vld [vmem:[%s10 + $0x18] sm:$0xff]
        %v1256 = vld [vmem:[%s10 + $0x20] sm:$0xff]
        %v1257 = vld [vmem:[%s10 + $0x28] sm:$0xff]
        %v1258 = vld [vmem:[%s10 + $0x30] sm:$0xff]
        %v1259 = vld [vmem:[%s10 + $0x38] sm:$0xff]
        %vm1260 = vcmask 523264
        %v1262 = vsel %vm1260, %v1251, 0
        %1264 = vmatpush.msra.mxu0 0.0
        %1265 = vmatpush.msra.mxu0 0.0
        %1266 = vmatpush.msra.mxu0 0.0
        %1267 = vmatpush.msra.mxu0 0.0
        %1268 = vmatpush.msra.mxu0 0.0
        %1269 = vmatpush.msra.mxu0 0.0
        %1270 = vmatpush.msra.mxu0 0.0
        %1271 = vmatpush.msra.mxu0 0.0
        %1272 = vmatpush.msra.mxu0 %v1259
        %1273 = vmatpush.msra.mxu0 %v1258
        %1274 = vmatpush.msra.mxu0 %v1257
        %1275 = vmatpush.msra.mxu0 %v1256
        %1276 = vmatpush.msra.mxu0 %v1255
        %1277 = vmatpush.msra.mxu0 %v1254
        %1278 = vmatpush.msra.mxu0 %v1253
        %1279 = vmatpush.msra.mxu0 %v1252
        %1280 = vmatmul.f32.gmra.mxu0 %v1262
        %v1281 = vpop.f32.mrf.mxu0
        %v1282 = vadd.f32 0.0, %v1281
        %1283 = vdwg.mxu0
        %v1284 = vadd.f32 %v1050, %v1282
        %v1285 = vld [vmem:[%s1 + $0x25] ss:$0 sm:$0xff]
        %v1286 = vadd.f32 %v1284, %v1285
        %v1287 = vld [vmem:[%s1 + $0x26] ss:$0 sm:$0xff]
        %v1288 = vld [vmem:[%s1 + $0x27] ss:$0 sm:$0xff]
        %v1289 = vsel %vm439, %v1286, 0.0
        %1290 = vadd.xlane.f32.xlu0 %v1289
        %v1291 = vpop.xlane.xlu0 %1290
        %v1292 = vmul.f32 %v1291, %v449
        %v1293 = vsub.f32 %v1286, %v1292
        %v1294 = vmul.f32 %v1293, %v1293
        %v1295 = vsel %vm439, %v1294, 0.0
        %1296 = vadd.xlane.f32.xlu0 %v1295
        %v1297 = vpop.xlane.xlu0 %1296
        %v1298 = vmul.f32 %v1297, %v449
        %v1299 = vadd.f32 %v1298, 1e-05
        %v1300 = vrsqrt.pop %v1299
        %v1301 = vmul.f32 %v1300, %v1299
        %v1302 = vmul.f32 %v1301, %v1300
        %v1303 = vmul.f32 0.5, %v1302
        %v1304 = vsub.f32 1.5, %v1303
        %v1305 = vmul.f32 %v1300, %v1304
        %vm1306 = vweird.f32 %v1299
        %vm1307 = vweird.f32 %v1300
        %vm1308 = vmor %vm1306, %vm1307
        %v1309 = vsel %vm1308, %v1300, %v1305
        %v1310 = vmul.f32 %v1293, %v1309
        %v1311 = vmul.f32 %v1310, %v1287
        %v1312 = vadd.f32 %v1311, %v1288
        %v1313 = vld [vmem:[%s11] sm:$0xff]
        %v1314 = vld [vmem:[%s11 + $0x8] sm:$0xff]
        %v1315 = vld [vmem:[%s11 + $0x10] sm:$0xff]
        %v1316 = vld [vmem:[%s11 + $0x18] sm:$0xff]
        %v1317 = vld [vmem:[%s11 + $0x20] sm:$0xff]
        %v1318 = vld [vmem:[%s11 + $0x28] sm:$0xff]
        %v1319 = vld [vmem:[%s11 + $0x30] sm:$0xff]
        %v1320 = vld [vmem:[%s11 + $0x38] sm:$0xff]
        %s1321 = scalar_lea.vmem %s1, 48
        %v1322 = vld [vmem:[%s1321] ss:$8 sm:$0x3]
        %v1324 = vperm.slane %v1322, 0
        %v1325 = vperm.slane %v1322, 1
        %v1329 = vsel %vm439, %v1312, 0
        %1331 = vmatpush.msra.mxu0 0.0
        %1332 = vmatpush.msra.mxu0 0.0
        %1333 = vmatpush.msra.mxu0 0.0
        %1334 = vmatpush.msra.mxu0 0.0
        %1335 = vmatpush.msra.mxu0 0.0
        %1336 = vmatpush.msra.mxu0 0.0
        %1337 = vmatpush.msra.mxu0 0.0
        %1338 = vmatpush.msra.mxu0 0.0
        %1339 = vmatpush.msra.mxu0 0.0
        %1340 = vmatpush.msra.mxu0 0.0
        %1341 = vmatpush.msra.mxu0 0.0
        %1342 = vmatpush.msra.mxu0 0.0
        %1343 = vmatpush.msra.mxu0 %v1319
        %1344 = vmatpush.msra.mxu0 %v1317
        %1345 = vmatpush.msra.mxu0 %v1315
        %1346 = vmatpush.msra.mxu0 %v1313
        %1347 = vmatmul.f32.gmra.mxu0 %v1329
        %v1348 = vpop.f32.mrf.mxu0
        %v1349 = vadd.f32 %v1324, %v1348
        %1350 = vdwg.mxu0
        %1351 = vmatpush.msra.mxu0 0.0
        %1352 = vmatpush.msra.mxu0 0.0
        %1353 = vmatpush.msra.mxu0 0.0
        %1354 = vmatpush.msra.mxu0 0.0
        %1355 = vmatpush.msra.mxu0 0.0
        %1356 = vmatpush.msra.mxu0 0.0
        %1357 = vmatpush.msra.mxu0 0.0
        %1358 = vmatpush.msra.mxu0 0.0
        %1359 = vmatpush.msra.mxu0 0.0
        %1360 = vmatpush.msra.mxu0 0.0
        %1361 = vmatpush.msra.mxu0 0.0
        %1362 = vmatpush.msra.mxu0 0.0
        %1363 = vmatpush.msra.mxu0 %v1320
        %1364 = vmatpush.msra.mxu0 %v1318
        %1365 = vmatpush.msra.mxu0 %v1316
        %1366 = vmatpush.msra.mxu0 %v1314
        %1367 = vmatmul.f32.gmra.mxu0 %v1329
        %v1368 = vpop.f32.mrf.mxu0
        %v1369 = vadd.f32 %v1325, %v1368
        %1370 = vdwg.mxu0
        %v1371 = vxor.u32 %v1369, 2147483648
        %v1372 = vmul.f32 %v1371, 1.442695
        %v1373 = vpow.pop %v1372
        %v1374 = vadd.f32 %v1373, 1.0
        %v1375 = vrcp.pop %v1374
        %v1376 = vmul.f32 %v1374, %v1375
        %v1377 = vsub.f32 1.0, %v1376
        %v1378 = vmul.f32 %v1375, %v1377
        %v1379 = vadd.f32 %v1375, %v1378
        %vm1380 = vweird.f32 %v1374
        %vm1381 = vweird.f32 %v1375
        %vm1382 = vmor %vm1380, %vm1381
        %v1383 = vsel %vm1382, %v1375, %v1379
        %v1384 = vand.u32 2147483647, %v1374
        %vm1385 = vcmp.eq.f32.partialorder %v1384, 8.507059e+37
        %v1386 = vand.u32 %v1374, 2147483648
        %v1387 = vor.u32 1.1754944e-38, %v1386
        %v1388 = vsel %vm1385, %v1387, %v1383
        %v1389 = vmul.f32 1.0, %v1388
        %v1390 = vmul.f32 %v1349, %v1389
        %v1391 = vld [vmem:[%s12] sm:$0xff]
        %v1392 = vld [vmem:[%s12 + $0x8] sm:$0xff]
        %v1393 = vld [vmem:[%s12 + $0x10] sm:$0xff]
        %v1394 = vld [vmem:[%s12 + $0x18] sm:$0xff]
        %v1395 = vld [vmem:[%s12 + $0x20] sm:$0xff]
        %v1396 = vld [vmem:[%s12 + $0x28] sm:$0xff]
        %v1397 = vld [vmem:[%s12 + $0x30] sm:$0xff]
        %v1398 = vld [vmem:[%s12 + $0x38] sm:$0xff]
        %v1399 = vld [vmem:[%s12 + $0x40] sm:$0xff]
        %v1400 = vld [vmem:[%s12 + $0x48] sm:$0xff]
        %v1401 = vld [vmem:[%s12 + $0x50] sm:$0xff]
        %v1402 = vld [vmem:[%s12 + $0x58] sm:$0xff]
        %v1403 = vld [vmem:[%s12 + $0x60] sm:$0xff]
        %v1404 = vld [vmem:[%s12 + $0x68] sm:$0xff]
        %v1405 = vld [vmem:[%s12 + $0x70] sm:$0xff]
        %v1406 = vld [vmem:[%s12 + $0x78] sm:$0xff]
        %v1407 = vld [vmem:[%s1 + $0x31] ss:$0 sm:$0xff]
        %1408 = vmatpush.msra.mxu0 %v1406
        %1409 = vmatpush.msra.mxu0 %v1405
        %1410 = vmatpush.msra.mxu0 %v1404
        %1411 = vmatpush.msra.mxu0 %v1403
        %1412 = vmatpush.msra.mxu0 %v1402
        %1413 = vmatpush.msra.mxu0 %v1401
        %1414 = vmatpush.msra.mxu0 %v1400
        %1415 = vmatpush.msra.mxu0 %v1399
        %1416 = vmatpush.msra.mxu0 %v1398
        %1417 = vmatpush.msra.mxu0 %v1397
        %1418 = vmatpush.msra.mxu0 %v1396
        %1419 = vmatpush.msra.mxu0 %v1395
        %1420 = vmatpush.msra.mxu0 %v1394
        %1421 = vmatpush.msra.mxu0 %v1393
        %1422 = vmatpush.msra.mxu0 %v1392
        %1423 = vmatpush.msra.mxu0 %v1391
        %1424 = vmatmul.f32.gmra.mxu0 %v1390
        %v1425 = vpop.f32.mrf.mxu0
        %v1426 = vadd.f32 %v1407, %v1425
        %1427 = vdwg.mxu0
        %v1428 = vmul.f32 %v1426, 0.5
        %v1429 = vadd.f32 %v1286, %v1428
        %v1430 = vld [vmem:[%s1 + $0x32] ss:$0 sm:$0xff]
        %v1431 = vld [vmem:[%s1 + $0x33] ss:$0 sm:$0xff]
        %v1432 = vsel %vm439, %v1429, 0.0
        %1433 = vadd.xlane.f32.xlu0 %v1432
        %v1434 = vpop.xlane.xlu0 %1433
        %v1435 = vmul.f32 %v1434, %v449
        %v1436 = vsub.f32 %v1429, %v1435
        %v1437 = vmul.f32 %v1436, %v1436
        %v1438 = vsel %vm439, %v1437, 0.0
        %1439 = vadd.xlane.f32.xlu0 %v1438
        %v1440 = vpop.xlane.xlu0 %1439
        %v1441 = vmul.f32 %v1440, %v449
        %v1442 = vadd.f32 %v1441, 1e-05
        %v1443 = vrsqrt.pop %v1442
        %v1444 = vmul.f32 %v1443, %v1442
        %v1445 = vmul.f32 %v1444, %v1443
        %v1446 = vmul.f32 0.5, %v1445
        %v1447 = vsub.f32 1.5, %v1446
        %v1448 = vmul.f32 %v1443, %v1447
        %vm1449 = vweird.f32 %v1442
        %vm1450 = vweird.f32 %v1443
        %vm1451 = vmor %vm1449, %vm1450
        %v1452 = vsel %vm1451, %v1443, %v1448
        %v1453 = vmul.f32 %v1436, %v1452
        %v1454 = vmul.f32 %v1453, %v1430
        %v1455 = vadd.f32 %v1454, %v1431
        %1456 = vst.msk [vmem:[%s431] sm:$0xff] %vm439, %v1455
        %s1457 = sand.u32 %s313, 1
        %s1458 = scalar_lea.sflag [#allocation3], %s1457
        %s1459 = sand.u32 %s313, 1
        %s1460 = smul.addr %s1459, 8
        %s1461 = scalar_lea.vmem [#allocation2], %s1460
        // Predicated region
        $region73: #{conformer_block_pallas.1} parent=71 // pred_check
          %p1462 = pneg %p323
        $region74: #{conformer_block_pallas.1} parent=71 // pred_check_branch
          %1464 = sbr.rel (%p1462) target = $region76
        $region75: #{conformer_block_pallas.1} parent=71 // pred_region
          %1466 = vsyncadd %s1458, 0
          %s1467 = smul.addr %s27, 8
          %s1468 = scalar_lea.hbm %s13, %s1467
          %s1470 = sshll.u32 %s1461, 4
          %s1471 = int_to_ptr.vmem [resolvable:$true] %s1470
          %s1472 = sshll.u32 %s1468, 4
          %s1473 = int_to_ptr.hbm [resolvable:$true] %s1472
          %1475 = dma.vmem_to_hbm [thread:$0]  %s1471, 128, %s1473, %s1458
        $region76: #{conformer_block_pallas.1} parent=71 // pred_fallthru
          _
      $region72: #{conformer_block_pallas.1} parent=5 // pred_fallthru
        _
      %p1476 = scmp.le.s32.totalorder 2, %s22
      // Predicated region
      $region77: #{conformer_block_pallas.1} parent=5 // pred_check
        %p1477 = pneg %p1476
      $region78: #{conformer_block_pallas.1} parent=5 // pred_check_branch
        %1479 = sbr.rel (%p1477) target = $region80
      $region79: #{conformer_block_pallas.1} parent=5 // pred_region
        %s1480 = ssub.s32 %s22, 2
        // Predicated region
        $region81: #{conformer_block_pallas.1} parent=79 // pred_check
          %p1481 = pneg %p329
        $region82: #{conformer_block_pallas.1} parent=79 // pred_check_branch
          %1483 = sbr.rel (%p1481) target = $region84
        $region83: #{conformer_block_pallas.1} parent=79 // pred_region
          %s1484 = sand.u32 %s314, 1
          %s1485 = scalar_lea.sflag [#allocation3], %s1484
          %s1486 = sand.u32 %s314, 1
          %s1487 = smul.addr %s1486, 8
          %s1488 = scalar_lea.vmem [#allocation2], %s1487
          %1490 = dma.done %s1485, 128
        $region84: #{conformer_block_pallas.1} parent=79 // pred_fallthru
          _
      $region80: #{conformer_block_pallas.1} parent=5 // pred_fallthru
        _
    $region6: #{conformer_block_pallas.1} parent=1 // loop_footer
      %s26 = sadd.s32 1, %s22
    $region7: #{conformer_block_pallas.1} parent=1 // loop_footer_branch
      %21 = sbr.rel target = $region3
    $region8: #{conformer_block_pallas.1} parent=1 // loop_exit
      _
    %1491 = vsyncpa [#allocation3], 1
    %s1492 = scalar_lea.sflag [#allocation3], 1
    %1493 = vsyncpa %s1492, 1

</llo_original>
